<compile_context>
chip_gen: v6e
topology: v6e:2x2x1
jax: 0.10.0
libtpu: 0.0.40
codegen_flags: <defaults>
</compile_context>

<pallas_src>
import functools

import jax
import jax.numpy as jnp
import numpy as np
from jax.experimental import pallas as pl
from jax.experimental.pallas import tpu as pltpu

# ----- static demo config (small shapes consistent with the module) -----
B = 2            # batch
N_POINT = 64     # n_point
N_SAMPLE = 8     # n_sample (K neighbors)
C = 3            # xyz channels
D = 128          # feature_dim (multiple of 128 -> lane-aligned per-neighbor blocks)
ALPHA = 0.2      # LeakyReLU negative slope
DROPOUT = 0.5    # unused in inference
TN = 64          # points per grid tile (toy value; BN must be divisible by TN)


# --------------------------------------------------------------------------------- #
#  Pallas kernel: one (point-tile, neighbor) grid step.                              #
# --------------------------------------------------------------------------------- #
def graph_attention_kernel(cxyz_ref, cfeat_ref, gxyz_ref, gfeat_ref,
                           axyz_ref, afeat_ref, out_ref,
                           clin_scr, m_scr, den_scr, num_scr, *, alpha):
    # Block shapes (tn points per tile, D = feature_dim):
    #   cxyz_ref  : (tn, 3)     f32       center xyz              (resident over k)
    #   cfeat_ref : (tn, D)     op dtype  center features         (resident over k)
    #   gxyz_ref  : (1, tn, 3)  f32       neighbor-k xyz slice
    #   gfeat_ref : (tn, D)     op dtype  neighbor-k feature slice
    #   axyz_ref  : (3, D)      f32       xyz rows of the attention weight
    #   afeat_ref : (D, D)      op dtype  feature rows of the attention weight
    #   out_ref   : (tn, D)     f32       graph pooling result (written at k = K-1)
    # Scratch (f32, persistent across the inner neighbor axis):
    #   clin_scr / m_scr / den_scr / num_scr : (tn, D)
    k = pl.program_id(1)

    @pl.when(k == 0)
    def _init():
        clin_scr[...] = (
            jnp.dot(cxyz_ref[...], axyz_ref[...], preferred_element_type=jnp.float32)
            + jnp.dot(cfeat_ref[...], afeat_ref[...],
                      preferred_element_type=jnp.float32))
        m_scr[...] = jnp.full(m_scr.shape, -jnp.inf, jnp.float32)
        den_scr[...] = jnp.zeros(den_scr.shape, jnp.float32)
        num_scr[...] = jnp.zeros(num_scr.shape, jnp.float32)

    # e_k = LeakyReLU((center - neighbor_k) @ a), built via linearity of the matmul.
    g_lin = (jnp.dot(gxyz_ref[0], axyz_ref[...], preferred_element_type=jnp.float32)
             + jnp.dot(gfeat_ref[...], afeat_ref[...],
                       preferred_element_type=jnp.float32))
    e = clin_scr[...] - g_lin
    e = jnp.where(e >= 0, e, alpha * e)                       # LeakyReLU (f32, VPU)

    # Online softmax over the neighbor (grid) axis, fused with the weighted pooling.
    m_new = jnp.maximum(m_scr[...], e)
    rescale = jnp.exp(m_scr[...] - m_new)                     # EUP
    p = jnp.exp(e - m_new)                                    # EUP
    den_scr[...] = den_scr[...] * rescale + p
    num_scr[...] = num_scr[...] * rescale + p * gfeat_ref[...].astype(jnp.float32)
    m_scr[...] = m_new

    # TODO(synk): training-mode dropout on the attention weights is not implemented
    #             (inference semantics: dropout == identity).
    @pl.when(k == pl.num_programs(1) - 1)
    def _finalize():
        out_ref[...] = (num_scr[...]
                        * pl.reciprocal(den_scr[...], approx=True)
                        ).astype(out_ref.dtype)


# --------------------------------------------------------------------------------- #
#  Wrapper                                                                           #
# --------------------------------------------------------------------------------- #
def graph_attention_forward(center_xyz, center_feature, grouped_xyz, grouped_feature,
                            a, *, alpha=ALPHA, tn=TN, operand_dtype=jnp.bfloat16):
    Bb, Np, Cc = center_xyz.shape
    _, _, Kk, Dd = grouped_feature.shape
    BN = Bb * Np
    assert BN % tn == 0 and tn % 8 == 0
    assert Dd % 128 == 0, "feature_dim must be a multiple of 128 for lane-aligned per-neighbor blocks"
    assert a.shape == (Cc + Dd, Dd)

    f32 = jnp.float32
    # Native-layout views only (no delta / concat / feature transposes in HBM).
    cxyz = center_xyz.reshape(BN, Cc).astype(f32)                       # (BN, 3)
    cfeat = center_feature.reshape(BN, Dd).astype(operand_dtype)        # (BN, D)
    # Free contiguous reshape: neighbor k = lane-aligned columns [k*D, (k+1)*D).
    gfeat = grouped_feature.reshape(BN, Kk * Dd).astype(operand_dtype)  # (BN, K*D)
    # Only the tiny xyz array is transposed so each neighbor is a (tn, 3) block.
    gxyz = jnp.transpose(grouped_xyz.reshape(BN, Kk, Cc), (1, 0, 2)).astype(f32)  # (K, BN, 3)
    # Split weight: exact-D contraction for features, tiny 3-row term for xyz.
    a_xyz = a[:Cc].astype(f32)                                          # (3, D)
    a_feat = a[Cc:].astype(operand_dtype)                               # (D, D)

    kernel = functools.partial(graph_attention_kernel, alpha=alpha)
    out_flat = pl.pallas_call(
        kernel,
        out_shape=jax.ShapeDtypeStruct((BN, Dd), f32),
        grid_spec=pltpu.PrefetchScalarGridSpec(
            num_scalar_prefetch=0,
            grid=(BN // tn, Kk),                                   # neighbor axis innermost
            in_specs=[
                pl.BlockSpec((tn, Cc), lambda i, k: (i, 0)),       # center xyz
                pl.BlockSpec((tn, Dd), lambda i, k: (i, 0)),       # center features
                pl.BlockSpec((1, tn, Cc), lambda i, k: (k, i, 0)),  # neighbor-k xyz
                pl.BlockSpec((tn, Dd), lambda i, k: (i, k)),       # neighbor-k features
                pl.BlockSpec((Cc, Dd), lambda i, k: (0, 0)),       # weight, xyz rows
                pl.BlockSpec((Dd, Dd), lambda i, k: (0, 0)),       # weight, feature rows
            ],
            out_specs=pl.BlockSpec((tn, Dd), lambda i, k: (i, 0)),
            scratch_shapes=[pltpu.VMEM((tn, Dd), f32)] * 4,        # c_lin, m, denom, num
        ),
        compiler_params=pltpu.CompilerParams(
            dimension_semantics=("parallel", "arbitrary")),
    )(cxyz, cfeat, gxyz, gfeat, a_xyz, a_feat)

    return out_flat.reshape(Bb, Np, Dd)


# --------------------------------------------------------------------------------- #
#  Pure-JAX reference (mirrors the PyTorch forward, eval-mode dropout)               #
# --------------------------------------------------------------------------------- #
def reference_forward(center_xyz, center_feature, grouped_xyz, grouped_feature, a,
                      *, alpha=ALPHA):
    delta_p = center_xyz[:, :, None, :] - grouped_xyz
    delta_h = center_feature[:, :, None, :] - grouped_feature
    cat = jnp.concatenate([delta_p, delta_h], axis=-1)          # (B, N, K, C+D)
    e = cat @ a
    e = jnp.where(e >= 0, e, alpha * e)
    attention = jax.nn.softmax(e, axis=2)                       # over n_sample
    return jnp.sum(attention * grouped_feature, axis=2)         # (B, N, D)


# --------------------------------------------------------------------------------- #
if __name__ == "__main__":
    key = jax.random.PRNGKey(0)
    k_cx, k_cf, k_gx, k_gf, k_a = jax.random.split(key, 5)

    center_xyz = jax.random.normal(k_cx, (B, N_POINT, C), dtype=jnp.float32)
    center_feature = jax.random.normal(k_cf, (B, N_POINT, D), dtype=jnp.float32)
    # synthetic neighbors: positions perturbed around each center
    grouped_xyz = (center_xyz[:, :, None, :]
                   + 0.1 * jax.random.normal(k_gx, (B, N_POINT, N_SAMPLE, C),
                                             dtype=jnp.float32))
    grouped_feature = jax.random.normal(k_gf, (B, N_POINT, N_SAMPLE, D),
                                        dtype=jnp.float32)

    # xavier_uniform_(gain=1.414) for a: (all_channel, feature_dim) = (C+D, D)
    gain = 1.414
    bound = gain * np.sqrt(6.0 / float((C + D) + D))
    a = jax.random.uniform(k_a, (C + D, D), dtype=jnp.float32,
                           minval=-bound, maxval=bound)

    out_ref = reference_forward(center_xyz, center_feature,
                                grouped_xyz, grouped_feature, a)

    # Full-precision path: tight check of the kernel structure.
    out_f32 = graph_attention_forward(center_xyz, center_feature,
                                      grouped_xyz, grouped_feature, a,
                                      operand_dtype=jnp.float32)
    out_f32 = jax.block_until_ready(out_f32)
    np.testing.assert_allclose(np.asarray(out_f32), np.asarray(out_ref),
                               rtol=5e-3, atol=5e-3)

    # bf16-operand path (the v6e/v7x performance default): softmax math stays f32.
    out_bf16 = graph_attention_forward(center_xyz, center_feature,
                                       grouped_xyz, grouped_feature, a,
                                       operand_dtype=jnp.bfloat16)
    out_bf16 = jax.block_until_ready(out_bf16)
    np.testing.assert_allclose(np.asarray(out_bf16), np.asarray(out_ref),
                               rtol=5e-2, atol=5e-2)

    print("KERNEL_OK")
</pallas_src>

<mosaic_0001>
module attributes {stable_mosaic.version = 11 : i64} {
  func.func @graph_attention_kernel(%arg0: i32, %arg1: i32, %arg2: memref<64x3xf32, #tpu.memory_space<vmem>>, %arg3: memref<64x128xf32, #tpu.memory_space<vmem>>, %arg4: memref<1x64x3xf32, #tpu.memory_space<vmem>>, %arg5: memref<64x128xf32, #tpu.memory_space<vmem>>, %arg6: memref<3x128xf32, #tpu.memory_space<vmem>>, %arg7: memref<128x128xf32, #tpu.memory_space<vmem>>, %arg8: memref<64x128xf32, #tpu.memory_space<vmem>>, %arg9: memref<64x128xf32, #tpu.memory_space<vmem>>, %arg10: memref<64x128xf32, #tpu.memory_space<vmem>>, %arg11: memref<64x128xf32, #tpu.memory_space<vmem>>, %arg12: memref<64x128xf32, #tpu.memory_space<vmem>>) attributes {dimension_semantics = [#tpu.dimension_semantics<parallel>, #tpu.dimension_semantics<arbitrary>], iteration_bounds = array<i64: 2, 8>, scalar_prefetch = 0 : i64, scratch_operands = 4 : i64, tpu.core_type = #tpu.core_type<tc>, window_params = [{transform_indices = @transform_0, window_bounds = array<i64: 64, 3>}, {transform_indices = @transform_1, window_bounds = array<i64: 64, 128>}, {transform_indices = @transform_2, window_bounds = array<i64: 1, 64, 3>}, {transform_indices = @transform_3, window_bounds = array<i64: 64, 128>}, {pipeline_mode = #tpu.pipeline_mode<synchronous>, transform_indices = @transform_4, window_bounds = array<i64: 3, 128>}, {pipeline_mode = #tpu.pipeline_mode<synchronous>, transform_indices = @transform_5, window_bounds = array<i64: 128, 128>}, {transform_indices = @transform_6, window_bounds = array<i64: 64, 128>}]} {
    %c0_i32 = arith.constant 0 : i32
    %0 = arith.cmpi eq, %arg1, %c0_i32 : i32
    %1 = arith.extui %0 : i1 to i32
    %c0_i32_0 = arith.constant 0 : i32
    %2 = arith.cmpi ne, %1, %c0_i32_0 : i32
    scf.if %2 {
      %c0_31 = arith.constant 0 : index
      %c0_32 = arith.constant 0 : index
      %39 = vector.load %arg2[%c0_31, %c0_32] : memref<64x3xf32, #tpu.memory_space<vmem>>, vector<64x3xf32>
      %c0_33 = arith.constant 0 : index
      %c0_34 = arith.constant 0 : index
      %40 = vector.load %arg6[%c0_33, %c0_34] : memref<3x128xf32, #tpu.memory_space<vmem>>, vector<3x128xf32>
      %cst_35 = arith.constant dense<0.000000e+00> : vector<64x128xf32>
      %41 = tpu.matmul %39, %40, %cst_35 {dimension_numbers = #tpu.dot_dimension_numbers<[1], [0], [0], [1], [0, 0, 1, 1], [], []>} : vector<64x3xf32>, vector<3x128xf32>, vector<64x128xf32> -> vector<64x128xf32>
      %c0_36 = arith.constant 0 : index
      %c0_37 = arith.constant 0 : index
      %42 = vector.load %arg3[%c0_36, %c0_37] : memref<64x128xf32, #tpu.memory_space<vmem>>, vector<64x128xf32>
      %c0_38 = arith.constant 0 : index
      %c0_39 = arith.constant 0 : index
      %43 = vector.load %arg7[%c0_38, %c0_39] : memref<128x128xf32, #tpu.memory_space<vmem>>, vector<128x128xf32>
      %cst_40 = arith.constant dense<0.000000e+00> : vector<64x128xf32>
      %44 = tpu.matmul %42, %43, %cst_40 {dimension_numbers = #tpu.dot_dimension_numbers<[1], [0], [0], [1], [0, 0, 1, 1], [], []>} : vector<64x128xf32>, vector<128x128xf32>, vector<64x128xf32> -> vector<64x128xf32>
      %45 = arith.addf %41, %44 : vector<64x128xf32>
      %c0_41 = arith.constant 0 : index
      %c0_42 = arith.constant 0 : index
      %46 = vector.load %arg9[%c0_41, %c0_42] : memref<64x128xf32, #tpu.memory_space<vmem>>, vector<64x128xf32>
      tpu.vector_store %arg9[%c0_41, %c0_42], %45 {strides = array<i32>} : memref<64x128xf32, #tpu.memory_space<vmem>>, vector<64x128xf32>,
      %cst_43 = arith.constant 0xFF800000 : f32
      %47 = vector.broadcast %cst_43 : f32 to vector<64x128xf32>
      %c0_44 = arith.constant 0 : index
      %c0_45 = arith.constant 0 : index
      %48 = vector.load %arg10[%c0_44, %c0_45] : memref<64x128xf32, #tpu.memory_space<vmem>>, vector<64x128xf32>
      tpu.vector_store %arg10[%c0_44, %c0_45], %47 {strides = array<i32>} : memref<64x128xf32, #tpu.memory_space<vmem>>, vector<64x128xf32>,
      %cst_46 = arith.constant 0.000000e+00 : f32
      %49 = vector.broadcast %cst_46 : f32 to vector<64x128xf32>
      %c0_47 = arith.constant 0 : index
      %c0_48 = arith.constant 0 : index
      %50 = vector.load %arg11[%c0_47, %c0_48] : memref<64x128xf32, #tpu.memory_space<vmem>>, vector<64x128xf32>
      tpu.vector_store %arg11[%c0_47, %c0_48], %49 {strides = array<i32>} : memref<64x128xf32, #tpu.memory_space<vmem>>, vector<64x128xf32>,
      %cst_49 = arith.constant 0.000000e+00 : f32
      %51 = vector.broadcast %cst_49 : f32 to vector<64x128xf32>
      %c0_50 = arith.constant 0 : index
      %c0_51 = arith.constant 0 : index
      %52 = vector.load %arg12[%c0_50, %c0_51] : memref<64x128xf32, #tpu.memory_space<vmem>>, vector<64x128xf32>
      tpu.vector_store %arg12[%c0_50, %c0_51], %51 {strides = array<i32>} : memref<64x128xf32, #tpu.memory_space<vmem>>, vector<64x128xf32>,
    } else {
    }
    %c0 = arith.constant 0 : index
    %c0_1 = arith.constant 0 : index
    %c0_2 = arith.constant 0 : index
    %3 = vector.load %arg4[%c0, %c0_1, %c0_2] : memref<1x64x3xf32, #tpu.memory_space<vmem>>, vector<1x64x3xf32>
    %4 = vector.shape_cast %3 : vector<1x64x3xf32> to vector<64x3xf32>
    %c0_3 = arith.constant 0 : index
    %c0_4 = arith.constant 0 : index
    %5 = vector.load %arg6[%c0_3, %c0_4] : memref<3x128xf32, #tpu.memory_space<vmem>>, vector<3x128xf32>
    %cst = arith.constant dense<0.000000e+00> : vector<64x128xf32>
    %6 = tpu.matmul %4, %5, %cst {dimension_numbers = #tpu.dot_dimension_numbers<[1], [0], [0], [1], [0, 0, 1, 1], [], []>} : vector<64x3xf32>, vector<3x128xf32>, vector<64x128xf32> -> vector<64x128xf32>
    %c0_5 = arith.constant 0 : index
    %c0_6 = arith.constant 0 : index
    %7 = vector.load %arg5[%c0_5, %c0_6] : memref<64x128xf32, #tpu.memory_space<vmem>>, vector<64x128xf32>
    %c0_7 = arith.constant 0 : index
    %c0_8 = arith.constant 0 : index
    %8 = vector.load %arg7[%c0_7, %c0_8] : memref<128x128xf32, #tpu.memory_space<vmem>>, vector<128x128xf32>
    %cst_9 = arith.constant dense<0.000000e+00> : vector<64x128xf32>
    %9 = tpu.matmul %7, %8, %cst_9 {dimension_numbers = #tpu.dot_dimension_numbers<[1], [0], [0], [1], [0, 0, 1, 1], [], []>} : vector<64x128xf32>, vector<128x128xf32>, vector<64x128xf32> -> vector<64x128xf32>
    %10 = arith.addf %6, %9 : vector<64x128xf32>
    %c0_10 = arith.constant 0 : index
    %c0_11 = arith.constant 0 : index
    %11 = vector.load %arg9[%c0_10, %c0_11] : memref<64x128xf32, #tpu.memory_space<vmem>>, vector<64x128xf32>
    %12 = arith.subf %11, %10 : vector<64x128xf32>
    %cst_12 = arith.constant 0.000000e+00 : f32
    %13 = vector.broadcast %cst_12 : f32 to vector<64x128xf32>
    %14 = arith.cmpf oge, %12, %13 : vector<64x128xf32>
    %cst_13 = arith.constant 2.000000e-01 : f32
    %15 = vector.broadcast %cst_13 : f32 to vector<64x128xf32>
    %16 = arith.mulf %15, %12 : vector<64x128xf32>
    %17 = arith.select %14, %12, %16 : vector<64x128xi1>, vector<64x128xf32>
    %c0_14 = arith.constant 0 : index
    %c0_15 = arith.constant 0 : index
    %18 = vector.load %arg10[%c0_14, %c0_15] : memref<64x128xf32, #tpu.memory_space<vmem>>, vector<64x128xf32>
    %19 = arith.maximumf %18, %17 : vector<64x128xf32>
    %c0_16 = arith.constant 0 : index
    %c0_17 = arith.constant 0 : index
    %20 = vector.load %arg10[%c0_16, %c0_17] : memref<64x128xf32, #tpu.memory_space<vmem>>, vector<64x128xf32>
    %21 = arith.subf %20, %19 : vector<64x128xf32>
    %22 = math.exp %21 : vector<64x128xf32>
    %23 = arith.subf %17, %19 : vector<64x128xf32>
    %24 = math.exp %23 : vector<64x128xf32>
    %c0_18 = arith.constant 0 : index
    %c0_19 = arith.constant 0 : index
    %25 = vector.load %arg11[%c0_18, %c0_19] : memref<64x128xf32, #tpu.memory_space<vmem>>, vector<64x128xf32>
    %26 = arith.mulf %25, %22 : vector<64x128xf32>
    %27 = arith.addf %26, %24 : vector<64x128xf32>
    %c0_20 = arith.constant 0 : index
    %c0_21 = arith.constant 0 : index
    %28 = vector.load %arg11[%c0_20, %c0_21] : memref<64x128xf32, #tpu.memory_space<vmem>>, vector<64x128xf32>
    tpu.vector_store %arg11[%c0_20, %c0_21], %27 {strides = array<i32>} : memref<64x128xf32, #tpu.memory_space<vmem>>, vector<64x128xf32>,
    %c0_22 = arith.constant 0 : index
    %c0_23 = arith.constant 0 : index
    %29 = vector.load %arg12[%c0_22, %c0_23] : memref<64x128xf32, #tpu.memory_space<vmem>>, vector<64x128xf32>
    %30 = arith.mulf %29, %22 : vector<64x128xf32>
    %c0_24 = arith.constant 0 : index
    %c0_25 = arith.constant 0 : index
    %31 = vector.load %arg5[%c0_24, %c0_25] : memref<64x128xf32, #tpu.memory_space<vmem>>, vector<64x128xf32>
    %32 = arith.mulf %24, %31 : vector<64x128xf32>
    %33 = arith.addf %30, %32 : vector<64x128xf32>
    %c0_26 = arith.constant 0 : index
    %c0_27 = arith.constant 0 : index
    %34 = vector.load %arg12[%c0_26, %c0_27] : memref<64x128xf32, #tpu.memory_space<vmem>>, vector<64x128xf32>
    tpu.vector_store %arg12[%c0_26, %c0_27], %33 {strides = array<i32>} : memref<64x128xf32, #tpu.memory_space<vmem>>, vector<64x128xf32>,
    %c0_28 = arith.constant 0 : index
    %c0_29 = arith.constant 0 : index
    %35 = vector.load %arg10[%c0_28, %c0_29] : memref<64x128xf32, #tpu.memory_space<vmem>>, vector<64x128xf32>
    tpu.vector_store %arg10[%c0_28, %c0_29], %19 {strides = array<i32>} : memref<64x128xf32, #tpu.memory_space<vmem>>, vector<64x128xf32>,
    %c7_i32 = arith.constant 7 : i32
    %36 = arith.cmpi eq, %arg1, %c7_i32 : i32
    %37 = arith.extui %36 : i1 to i32
    %c0_i32_30 = arith.constant 0 : i32
    %38 = arith.cmpi ne, %37, %c0_i32_30 : i32
    scf.if %38 {
      %c0_31 = arith.constant 0 : index
      %c0_32 = arith.constant 0 : index
      %39 = vector.load %arg12[%c0_31, %c0_32] : memref<64x128xf32, #tpu.memory_space<vmem>>, vector<64x128xf32>
      %c0_33 = arith.constant 0 : index
      %c0_34 = arith.constant 0 : index
      %40 = vector.load %arg11[%c0_33, %c0_34] : memref<64x128xf32, #tpu.memory_space<vmem>>, vector<64x128xf32>
      %41 = tpu.reciprocal %40 {approx = true} : vector<64x128xf32> -> vector<64x128xf32>
      %42 = arith.mulf %39, %41 : vector<64x128xf32>
      %c0_35 = arith.constant 0 : index
      %c0_36 = arith.constant 0 : index
      %43 = vector.load %arg8[%c0_35, %c0_36] : memref<64x128xf32, #tpu.memory_space<vmem>>, vector<64x128xf32>
      tpu.vector_store %arg8[%c0_35, %c0_36], %42 {strides = array<i32>} : memref<64x128xf32, #tpu.memory_space<vmem>>, vector<64x128xf32>,
    } else {
    }
    return
  }
  func.func @transform_0(%arg0: i32, %arg1: i32) -> (i32, i32) {
    %c0_i32 = arith.constant 0 : i32
    %c0_i32_0 = arith.constant 0 : i32
    return %arg0, %c0_i32 : i32, i32
  }
  func.func @transform_1(%arg0: i32, %arg1: i32) -> (i32, i32) {
    %c0_i32 = arith.constant 0 : i32
    %c0_i32_0 = arith.constant 0 : i32
    return %arg0, %c0_i32 : i32, i32
  }
  func.func @transform_2(%arg0: i32, %arg1: i32) -> (i32, i32, i32) {
    %c0_i32 = arith.constant 0 : i32
    %c0_i32_0 = arith.constant 0 : i32
    return %arg1, %arg0, %c0_i32 : i32, i32, i32
  }
  func.func @transform_3(%arg0: i32, %arg1: i32) -> (i32, i32) {
    %c0_i32 = arith.constant 0 : i32
    return %arg0, %arg1 : i32, i32
  }
  func.func @transform_4(%arg0: i32, %arg1: i32) -> (i32, i32) {
    %c0_i32 = arith.constant 0 : i32
    %c0_i32_0 = arith.constant 0 : i32
    %c0_i32_1 = arith.constant 0 : i32
    return %c0_i32, %c0_i32_0 : i32, i32
  }
  func.func @transform_5(%arg0: i32, %arg1: i32) -> (i32, i32) {
    %c0_i32 = arith.constant 0 : i32
    %c0_i32_0 = arith.constant 0 : i32
    %c0_i32_1 = arith.constant 0 : i32
    return %c0_i32, %c0_i32_0 : i32, i32
  }
  func.func @transform_6(%arg0: i32, %arg1: i32) -> (i32, i32) {
    %c0_i32 = arith.constant 0 : i32
    %c0_i32_0 = arith.constant 0 : i32
    return %arg0, %c0_i32 : i32, i32
  }
}

</mosaic_0001>

<llo_original>
// kernel: tpu_custom_call.1
$region0: #{tpu_custom_call.1}
  #allocation0 [shape = 'u32[]', space=smem, size = 0x4, offset = 0x4, fixed_abs, tag = 'smem constant byte address 0x4 - core index']
  #allocation1 [shape = 'u32[144,128]{1,0:T(1,128)}', space=vmem, size = 0x12000, scoped, tag = 'internal scratch']
  #allocation2 [shape = 'f32[64,128]{1,0:T(8,128)}', space=vmem, size = 0x8000, scoped, tag = 'scratch operand']
  #allocation3 [shape = 'f32[64,128]{1,0:T(8,128)}', space=vmem, size = 0x8000, scoped, tag = 'scratch operand']
  #allocation4 [shape = 'f32[64,128]{1,0:T(8,128)}', space=vmem, size = 0x8000, scoped, tag = 'scratch operand']
  #allocation5 [shape = 'f32[64,128]{1,0:T(8,128)}', space=vmem, size = 0x8000, scoped, tag = 'scratch operand']
  %s0 = inlined_call_operand.vmem [shape: f32[128,3], index: 0, kind: input, shape index: {}]
  %s1 = inlined_call_operand.vmem [shape: f32[128,128], index: 1, kind: input, shape index: {}]
  %s2 = inlined_call_operand.vmem [shape: f32[8,128,3], index: 2, kind: input, shape index: {}]
  %s3 = inlined_call_operand.vmem [shape: f32[128,1024], index: 3, kind: input, shape index: {}]
  %s4 = inlined_call_operand.vmem [shape: f32[3,128], index: 4, kind: input, shape index: {}]
  %s5 = inlined_call_operand.hbm [shape: f32[128,128], index: 5, kind: input, shape index: {}]
  %s6 = inlined_call_operand.hbm [shape: f32[128,128], index: 6, kind: output, shape index: {}]
  %s7 = sld [smem:[#allocation0]]
  $region107: #{tpu_custom_call.1} parent=0
    _
  %s9 = ssub.s32 1, %s7
  %s10 = scalar_select 0, %s9, %s7
  $region1: #{tpu_custom_call.1} parent=0
    #allocation6 [shape = 'u8[65536]{0}', space=vmem, size = 0x10000, scoped, tag = 'input window, operand 3']
    #allocation7 [shape = 'u8[65536]{0}', space=vmem, size = 0x10000, scoped, tag = 'input window, operand 5, single buffered']
    #allocation8 [shape = 's32[2]{0}', space=sflag, size = 0x8, scoped, tag = 'scoped memory for tpu_custom_call.1']
    #allocation9 [shape = 's32[2]{0}', space=sflag, size = 0x8, scoped, tag = 'scoped memory for tpu_custom_call.1']
    #allocation10 [shape = 'u8[65536]{0}', space=vmem, size = 0x10000, scoped, tag = 'output window, operand 0']
    %11 = vsyncpa [#allocation8], 0
    %12 = vsyncpa [#allocation9], 0
    %s13 = scalar_lea.sflag [#allocation9], 1
    %14 = vsyncpa %s13, 0
    loop: start=0, step=1, limit=18
    $region2: #{tpu_custom_call.1} parent=1 // loop_pre_header
      _
    $region3: #{tpu_custom_call.1} parent=1 // loop_header
      %s16 = sphi 0, %s20
      %p17 = scmp.ge.s32.totalorder %s16, 18
      %s23 = sphi 0, %s35
      %s24 = sphi 0, %s31
      %s25 = sphi 0, %s23
      %s26 = sphi 0, %s24
      %s27 = sphi 0, %s25
      %s28 = sphi 0, %s26
      %s38 = sphi 0, %s40
      %s41 = sphi 0, %s38
      %s42 = sphi 0, %s41
      %s58 = sphi 0, %s42
      %s64 = sphi 0, %s66
      %s67 = sphi 0, %s64
      %s68 = sphi 0, %s67
      %s84 = sphi 0, %s68
      %s92 = sphi 0, %s94
      %s95 = sphi 0, %s92
      %s96 = sphi 0, %s95
      %s112 = sphi 0, %s96
      %s120 = sphi 0, %s122
      %s123 = sphi 0, %s120
      %s124 = sphi 0, %s123
      %s140 = sphi 0, %s124
      %s144 = sphi 0, %s144
      %s146 = sphi 0, %s144
      %s147 = sphi 0, %s146
      %s161 = sphi 0, %s147
      %s165 = sphi 0, %s165
      %s167 = sphi 0, %s165
      %s168 = sphi 0, %s167
      %s182 = sphi 0, %s168
      %s188 = sphi 0, %s190
      %s191 = sphi 0, %s188
      %s192 = sphi 0, %s191
      %s208 = sphi 0, %s192
    $region4: #{tpu_custom_call.1} parent=1 // loop_header_branch
      %19 = sbr.rel (%p17) target = $region8
    $region5: #{tpu_custom_call.1} parent=1 // loop_body
      %s21 = ssub.s32 %s16, 1
      %s22 = ssub.s32 %s16, 2
      %s29 = sadd.s32 1, %s24
      %p30 = scmp.ge.s32.totalorder %s29, 8
      %s31 = scalar_select %p30, 0, %s29
      %s32 = sadd.s32 1, %s23
      %s33 = scalar_select %p30, %s32, %s23
      %p34 = scmp.ge.s32.totalorder %s33, 2
      %s35 = scalar_select %p34, 0, %s33
      %s36 = ssub.s32 %s23, %s35
      %p37 = scmp.eq.s32.totalorder %s36, 0
      %s39 = sadd.s32 %s38, 1
      %s40 = scalar_select %p37, %s38, %s39
      %p43 = pneg %p37
      %p44 = scmp.eq.s32.totalorder %s16, 15
      %p45 = por %p43, %p44
      %p46 = scmp.ne.s32.totalorder %s38, %s41
      %p47 = scmp.eq.s32.totalorder %s16, 0
      %p48 = por %p46, %p47
      %p49 = scmp.ne.s32.totalorder %s38, %s41
      %p50 = scmp.eq.s32.totalorder %s21, 15
      %p51 = por %p49, %p50
      %p52 = scmp.ne.s32.totalorder %s41, %s42
      %p53 = scmp.eq.s32.totalorder %s21, 0
      %p54 = por %p52, %p53
      %p55 = scmp.ne.s32.totalorder %s41, %s42
      %p56 = scmp.eq.s32.totalorder %s22, 15
      %p57 = por %p55, %p56
      %p59 = scmp.ne.s32.totalorder %s42, %s58
      %p60 = scmp.eq.s32.totalorder %s22, 0
      %p61 = por %p59, %p60
      %s62 = ssub.s32 %s23, %s35
      %p63 = scmp.eq.s32.totalorder %s62, 0
      %s65 = sadd.s32 %s64, 1
      %s66 = scalar_select %p63, %s64, %s65
      %p69 = pneg %p63
      %p70 = scmp.eq.s32.totalorder %s16, 15
      %p71 = por %p69, %p70
      %p72 = scmp.ne.s32.totalorder %s64, %s67
      %p73 = scmp.eq.s32.totalorder %s16, 0
      %p74 = por %p72, %p73
      %p75 = scmp.ne.s32.totalorder %s64, %s67
      %p76 = scmp.eq.s32.totalorder %s21, 15
      %p77 = por %p75, %p76
      %p78 = scmp.ne.s32.totalorder %s67, %s68
      %p79 = scmp.eq.s32.totalorder %s21, 0
      %p80 = por %p78, %p79
      %p81 = scmp.ne.s32.totalorder %s67, %s68
      %p82 = scmp.eq.s32.totalorder %s22, 15
      %p83 = por %p81, %p82
      %p85 = scmp.ne.s32.totalorder %s68, %s84
      %p86 = scmp.eq.s32.totalorder %s22, 0
      %p87 = por %p85, %p86
      %s88 = ssub.s32 %s24, %s31
      %s89 = ssub.s32 %s23, %s35
      %s90 = sor.u32 %s88, %s89
      %p91 = scmp.eq.s32.totalorder %s90, 0
      %s93 = sadd.s32 %s92, 1
      %s94 = scalar_select %p91, %s92, %s93
      %p97 = pneg %p91
      %p98 = scmp.eq.s32.totalorder %s16, 15
      %p99 = por %p97, %p98
      %p100 = scmp.ne.s32.totalorder %s92, %s95
      %p101 = scmp.eq.s32.totalorder %s16, 0
      %p102 = por %p100, %p101
      %p103 = scmp.ne.s32.totalorder %s92, %s95
      %p104 = scmp.eq.s32.totalorder %s21, 15
      %p105 = por %p103, %p104
      %p106 = scmp.ne.s32.totalorder %s95, %s96
      %p107 = scmp.eq.s32.totalorder %s21, 0
      %p108 = por %p106, %p107
      %p109 = scmp.ne.s32.totalorder %s95, %s96
      %p110 = scmp.eq.s32.totalorder %s22, 15
      %p111 = por %p109, %p110
      %p113 = scmp.ne.s32.totalorder %s96, %s112
      %p114 = scmp.eq.s32.totalorder %s22, 0
      %p115 = por %p113, %p114
      %s116 = ssub.s32 %s23, %s35
      %s117 = ssub.s32 %s24, %s31
      %s118 = sor.u32 %s116, %s117
      %p119 = scmp.eq.s32.totalorder %s118, 0
      %s121 = sadd.s32 %s120, 1
      %s122 = scalar_select %p119, %s120, %s121
      %p125 = pneg %p119
      %p126 = scmp.eq.s32.totalorder %s16, 15
      %p127 = por %p125, %p126
      %p128 = scmp.ne.s32.totalorder %s120, %s123
      %p129 = scmp.eq.s32.totalorder %s16, 0
      %p130 = por %p128, %p129
      %p131 = scmp.ne.s32.totalorder %s120, %s123
      %p132 = scmp.eq.s32.totalorder %s21, 15
      %p133 = por %p131, %p132
      %p134 = scmp.ne.s32.totalorder %s123, %s124
      %p135 = scmp.eq.s32.totalorder %s21, 0
      %p136 = por %p134, %p135
      %p137 = scmp.ne.s32.totalorder %s123, %s124
      %p138 = scmp.eq.s32.totalorder %s22, 15
      %p139 = por %p137, %p138
      %p141 = scmp.ne.s32.totalorder %s124, %s140
      %p142 = scmp.eq.s32.totalorder %s22, 0
      %p143 = por %p141, %p142
      %s145 = sadd.s32 %s144, 1
      %p148 = scmp.eq.s32.totalorder %s16, 15
      %p149 = scmp.ne.s32.totalorder %s144, %s146
      %p150 = scmp.eq.s32.totalorder %s16, 0
      %p151 = por %p149, %p150
      %p152 = scmp.ne.s32.totalorder %s144, %s146
      %p153 = scmp.eq.s32.totalorder %s21, 15
      %p154 = por %p152, %p153
      %p155 = scmp.ne.s32.totalorder %s146, %s147
      %p156 = scmp.eq.s32.totalorder %s21, 0
      %p157 = por %p155, %p156
      %p158 = scmp.ne.s32.totalorder %s146, %s147
      %p159 = scmp.eq.s32.totalorder %s22, 15
      %p160 = por %p158, %p159
      %p162 = scmp.ne.s32.totalorder %s147, %s161
      %p163 = scmp.eq.s32.totalorder %s22, 0
      %p164 = por %p162, %p163
      %s166 = sadd.s32 %s165, 1
      %p169 = scmp.eq.s32.totalorder %s16, 15
      %p170 = scmp.ne.s32.totalorder %s165, %s167
      %p171 = scmp.eq.s32.totalorder %s16, 0
      %p172 = por %p170, %p171
      %p173 = scmp.ne.s32.totalorder %s165, %s167
      %p174 = scmp.eq.s32.totalorder %s21, 15
      %p175 = por %p173, %p174
      %p176 = scmp.ne.s32.totalorder %s167, %s168
      %p177 = scmp.eq.s32.totalorder %s21, 0
      %p178 = por %p176, %p177
      %p179 = scmp.ne.s32.totalorder %s167, %s168
      %p180 = scmp.eq.s32.totalorder %s22, 15
      %p181 = por %p179, %p180
      %p183 = scmp.ne.s32.totalorder %s168, %s182
      %p184 = scmp.eq.s32.totalorder %s22, 0
      %p185 = por %p183, %p184
      %s186 = ssub.s32 %s23, %s35
      %p187 = scmp.eq.s32.totalorder %s186, 0
      %s189 = sadd.s32 %s188, 1
      %s190 = scalar_select %p187, %s188, %s189
      %p193 = pneg %p187
      %p194 = scmp.eq.s32.totalorder %s16, 15
      %p195 = por %p193, %p194
      %p196 = scmp.ne.s32.totalorder %s188, %s191
      %p197 = scmp.eq.s32.totalorder %s16, 0
      %p198 = por %p196, %p197
      %p199 = scmp.ne.s32.totalorder %s188, %s191
      %p200 = scmp.eq.s32.totalorder %s21, 15
      %p201 = por %p199, %p200
      %p202 = scmp.ne.s32.totalorder %s191, %s192
      %p203 = scmp.eq.s32.totalorder %s21, 0
      %p204 = por %p202, %p203
      %p205 = scmp.ne.s32.totalorder %s191, %s192
      %p206 = scmp.eq.s32.totalorder %s22, 15
      %p207 = por %p205, %p206
      %p209 = scmp.ne.s32.totalorder %s192, %s208
      %p210 = scmp.eq.s32.totalorder %s22, 0
      %p211 = por %p209, %p210
      %p212 = scmp.le.s32.totalorder 1, %s16
      %p213 = scmp.lt.s32.totalorder %s16, 17
      %p214 = pnand %p212, %p213
      %p215 = pneg %p214
      // Predicated region
      $region9: #{tpu_custom_call.1} parent=5 // pred_check
        _
      $region10: #{tpu_custom_call.1} parent=5 // pred_check_branch
        %217 = sbr.rel (%p214) target = $region12
      $region11: #{tpu_custom_call.1} parent=5 // pred_region
        %s218 = ssub.s32 %s16, 1
        // Predicated region
        $region13: #{tpu_custom_call.1} parent=11 // pred_check
          %p219 = pneg %p157
        $region14: #{tpu_custom_call.1} parent=11 // pred_check_branch
          %221 = sbr.rel (%p219) target = $region16
        $region15: #{tpu_custom_call.1} parent=11 // pred_region
          _
        $region16: #{tpu_custom_call.1} parent=11 // pred_fallthru
          _
        // Predicated region
        $region17: #{tpu_custom_call.1} parent=11 // pred_check
          %p222 = pneg %p178
        $region18: #{tpu_custom_call.1} parent=11 // pred_check_branch
          %224 = sbr.rel (%p222) target = $region20
        $region19: #{tpu_custom_call.1} parent=11 // pred_region
          %s226 = ssub.s32 2048, 2048
          %227 = vsyncadd [#allocation8], %s226
          %s228 = sshll.u32 [#allocation7], 4
          %s229 = int_to_ptr.vmem [resolvable:$true] %s228
          %234 = dma.hbm_to_vmem [thread:$0]  %s5, 2048, %s229, [#allocation8], 128, 128, 8
        $region20: #{tpu_custom_call.1} parent=11 // pred_fallthru
          _
      $region12: #{tpu_custom_call.1} parent=5 // pred_fallthru
        _
      %p235 = scmp.lt.s32.totalorder %s16, 16
      // Predicated region
      $region21: #{tpu_custom_call.1} parent=5 // pred_check
        %p236 = pneg %p235
      $region22: #{tpu_custom_call.1} parent=5 // pred_check_branch
        %238 = sbr.rel (%p236) target = $region24
      $region23: #{tpu_custom_call.1} parent=5 // pred_region
        // Predicated region
        $region25: #{tpu_custom_call.1} parent=23 // pred_check
          %p239 = pneg %p48
        $region26: #{tpu_custom_call.1} parent=23 // pred_check_branch
          %241 = sbr.rel (%p239) target = $region28
        $region27: #{tpu_custom_call.1} parent=23 // pred_region
          %s242 = smul.u32 8, %s23
          %p243 = scmp.lt.s32.totalorder %s242, 15
          %s244 = scalar_select %p243, %s242, 15
          %s245 = smul.addr %s244, 8
          %s246 = scalar_lea.vmem %s0, %s245
          %s247 = smul.u32 8, %s23
        $region28: #{tpu_custom_call.1} parent=23 // pred_fallthru
          _
        // Predicated region
        $region29: #{tpu_custom_call.1} parent=23 // pred_check
          %p248 = pneg %p74
        $region30: #{tpu_custom_call.1} parent=23 // pred_check_branch
          %250 = sbr.rel (%p248) target = $region32
        $region31: #{tpu_custom_call.1} parent=23 // pred_region
          %s251 = smul.u32 8, %s23
          %p252 = scmp.lt.s32.totalorder %s251, 15
          %s253 = scalar_select %p252, %s251, 15
          %s254 = smul.addr %s253, 8
          %s255 = scalar_lea.vmem %s1, %s254
          %s256 = smul.u32 8, %s23
        $region32: #{tpu_custom_call.1} parent=23 // pred_fallthru
          _
        // Predicated region
        $region33: #{tpu_custom_call.1} parent=23 // pred_check
          %p257 = pneg %p102
        $region34: #{tpu_custom_call.1} parent=23 // pred_check_branch
          %259 = sbr.rel (%p257) target = $region36
        $region35: #{tpu_custom_call.1} parent=23 // pred_region
          %s260 = smul.u32 8, %s23
          %p261 = scmp.lt.s32.totalorder %s24, 7
          %s262 = scalar_select %p261, %s24, 7
          %p263 = scmp.lt.s32.totalorder %s260, 15
          %s264 = scalar_select %p263, %s260, 15
          %s265 = smul.addr %s262, 16
          %s266 = sadd.s32 %s264, %s265
          %s267 = smul.addr %s266, 8
          %s268 = scalar_lea.vmem %s2, %s267
          %s269 = smul.u32 8, %s23
        $region36: #{tpu_custom_call.1} parent=23 // pred_fallthru
          _
        // Predicated region
        $region37: #{tpu_custom_call.1} parent=23 // pred_check
          %p270 = pneg %p130
        $region38: #{tpu_custom_call.1} parent=23 // pred_check_branch
          %272 = sbr.rel (%p270) target = $region40
        $region39: #{tpu_custom_call.1} parent=23 // pred_region
          %s273 = sand.u32 %s120, 1
          %s274 = sand.u32 %s120, 1
          %s275 = smul.addr %s274, 64
          %s276 = scalar_lea.vmem [#allocation6], %s275
          %s277 = smul.u32 8, %s23
          %s278 = smul.addr %s277, 8
          %s279 = sadd.s32 %s24, %s278
          %s280 = smul.addr %s279, 8
          %s281 = scalar_lea.vmem %s3, %s280
          // Predicated region
          $region41: #{tpu_custom_call.1} parent=39 // pred_check
            _
          $region42: #{tpu_custom_call.1} parent=39 // pred_check_branch
            %283 = sbr.rel (0) target = $region44
          $region43: #{tpu_custom_call.1} parent=39 // pred_region
            // Predicated region
            $region45: #{tpu_custom_call.1} parent=43 // pred_check
              _
            $region46: #{tpu_custom_call.1} parent=43 // pred_check_branch
              %285 = sbr.rel (0) target = $region48
            $region47: #{tpu_custom_call.1} parent=43 // pred_region
              // Predicated region
              $region60: #{tpu_custom_call.1} parent=47 // pred_check
                _
              $region61: #{tpu_custom_call.1} parent=47 // pred_check_branch
                %315 = sbr.rel (0) target = $region63
              $region62: #{tpu_custom_call.1} parent=47 // pred_region
                loop: start=0, step=1, limit=1
                $region64: #{tpu_custom_call.1} parent=62 // loop_pre_header
                  _
                $region65: #{tpu_custom_call.1} parent=62 // loop_header
                  %s317 = sphi 0, %s321
                  %p318 = scmp.ge.s32.totalorder %s317, 1
                  %s322 = sphi %s281, %s281
                  %s323 = sphi %s276, %s276
                $region66: #{tpu_custom_call.1} parent=62 // loop_header_branch
                  %320 = sbr.rel (%p318) target = $region70
                $region67: #{tpu_custom_call.1} parent=62 // loop_body
                  %v324 = vld [vmem:[%s322] sm:$0xff]
                  %325 = vst [vmem:[%s323] sm:$0xff] %v324
                  %v326 = vld [vmem:[%s322 + $0x40] sm:$0xff]
                  %327 = vst [vmem:[%s323 + $0x8] sm:$0xff] %v326
                  %v328 = vld [vmem:[%s322 + $0x80] sm:$0xff]
                  %329 = vst [vmem:[%s323 + $0x10] sm:$0xff] %v328
                  %v330 = vld [vmem:[%s322 + $0xc0] sm:$0xff]
                  %331 = vst [vmem:[%s323 + $0x18] sm:$0xff] %v330
                  %v332 = vld [vmem:[%s322 + $0x100] sm:$0xff]
                  %333 = vst [vmem:[%s323 + $0x20] sm:$0xff] %v332
                  %v334 = vld [vmem:[%s322 + $0x140] sm:$0xff]
                  %335 = vst [vmem:[%s323 + $0x28] sm:$0xff] %v334
                  %v336 = vld [vmem:[%s322 + $0x180] sm:$0xff]
                  %337 = vst [vmem:[%s323 + $0x30] sm:$0xff] %v336
                  %v338 = vld [vmem:[%s322 + $0x1c0] sm:$0xff]
                  %339 = vst [vmem:[%s323 + $0x38] sm:$0xff] %v338
                $region68: #{tpu_custom_call.1} parent=62 // loop_footer
                  %s321 = sadd.s32 1, %s317
                $region69: #{tpu_custom_call.1} parent=62 // loop_footer_branch
                  %316 = sbr.rel target = $region65
                $region70: #{tpu_custom_call.1} parent=62 // loop_exit
                  _
              $region63: #{tpu_custom_call.1} parent=47 // pred_fallthru
                _
              // Predicated region
              $region71: #{tpu_custom_call.1} parent=47 // pred_check
                _
              $region72: #{tpu_custom_call.1} parent=47 // pred_check_branch
                %341 = sbr.rel target = $region74
              $region73: #{tpu_custom_call.1} parent=47 // pred_region
                _
              $region74: #{tpu_custom_call.1} parent=47 // pred_fallthru
                _
            $region48: #{tpu_custom_call.1} parent=43 // pred_fallthru
              _
            // Predicated region
            $region49: #{tpu_custom_call.1} parent=43 // pred_check
              _
            $region50: #{tpu_custom_call.1} parent=43 // pred_check_branch
              %287 = sbr.rel target = $region52
            $region51: #{tpu_custom_call.1} parent=43 // pred_region
              %s289 = ssub.s32 256, 1
              loop: start=0, step=1, limit=1
              $region53: #{tpu_custom_call.1} parent=51 // loop_pre_header
                _
              $region54: #{tpu_custom_call.1} parent=51 // loop_header
                %s291 = sphi 0, %s295
                %p292 = scmp.ge.s32.totalorder %s291, 1
                %s296 = sphi %s281, %s281
                %s297 = sphi %s276, %s276
              $region55: #{tpu_custom_call.1} parent=51 // loop_header_branch
                %294 = sbr.rel (%p292) target = $region59
              $region56: #{tpu_custom_call.1} parent=51 // loop_body
                %v298 = vld [vmem:[%s296] sm:%s289]
                %299 = vst [vmem:[%s297] sm:%s289] %v298
                %v300 = vld [vmem:[%s296 + $0x40] sm:%s289]
                %301 = vst [vmem:[%s297 + $0x8] sm:%s289] %v300
                %v302 = vld [vmem:[%s296 + $0x80] sm:%s289]
                %303 = vst [vmem:[%s297 + $0x10] sm:%s289] %v302
                %v304 = vld [vmem:[%s296 + $0xc0] sm:%s289]
                %305 = vst [vmem:[%s297 + $0x18] sm:%s289] %v304
                %v306 = vld [vmem:[%s296 + $0x100] sm:%s289]
                %307 = vst [vmem:[%s297 + $0x20] sm:%s289] %v306
                %v308 = vld [vmem:[%s296 + $0x140] sm:%s289]
                %309 = vst [vmem:[%s297 + $0x28] sm:%s289] %v308
                %v310 = vld [vmem:[%s296 + $0x180] sm:%s289]
                %311 = vst [vmem:[%s297 + $0x30] sm:%s289] %v310
                %v312 = vld [vmem:[%s296 + $0x1c0] sm:%s289]
                %313 = vst [vmem:[%s297 + $0x38] sm:%s289] %v312
              $region57: #{tpu_custom_call.1} parent=51 // loop_footer
                %s295 = sadd.s32 1, %s291
              $region58: #{tpu_custom_call.1} parent=51 // loop_footer_branch
                %290 = sbr.rel target = $region54
              $region59: #{tpu_custom_call.1} parent=51 // loop_exit
                _
            $region52: #{tpu_custom_call.1} parent=43 // pred_fallthru
              _
          $region44: #{tpu_custom_call.1} parent=39 // pred_fallthru
            _
          %342 = vnop
        $region40: #{tpu_custom_call.1} parent=23 // pred_fallthru
          _
      $region24: #{tpu_custom_call.1} parent=5 // pred_fallthru
        _
      %p343 = scmp.le.s32.totalorder 1, %s16
      %p344 = scmp.lt.s32.totalorder %s16, 17
      %p345 = pnand %p343, %p344
      %p346 = pneg %p345
      // Predicated region
      $region75: #{tpu_custom_call.1} parent=5 // pred_check
        _
      $region76: #{tpu_custom_call.1} parent=5 // pred_check_branch
        %348 = sbr.rel (%p345) target = $region78
      $region77: #{tpu_custom_call.1} parent=5 // pred_region
        %s349 = ssub.s32 %s16, 1
        %s350 = sand.u32 %s123, 1
        %s351 = sand.u32 %s123, 1
        %s352 = smul.addr %s351, 64
        %s353 = scalar_lea.vmem [#allocation6], %s352
        // Predicated region
        $region79: #{tpu_custom_call.1} parent=77 // pred_check
          %p354 = pneg %p136
        $region80: #{tpu_custom_call.1} parent=77 // pred_check_branch
          %356 = sbr.rel (%p354) target = $region82
        $region81: #{tpu_custom_call.1} parent=77 // pred_region
          _
        $region82: #{tpu_custom_call.1} parent=77 // pred_fallthru
          _
        // Predicated region
        $region83: #{tpu_custom_call.1} parent=77 // pred_check
          %p357 = pneg %p178
        $region84: #{tpu_custom_call.1} parent=77 // pred_check_branch
          %359 = sbr.rel (%p357) target = $region86
        $region85: #{tpu_custom_call.1} parent=77 // pred_region
          %360 = dma.done [#allocation8], 2048
        $region86: #{tpu_custom_call.1} parent=77 // pred_fallthru
          _
        %s361 = smul.u32 8, %s25
        %p362 = scmp.lt.s32.totalorder %s361, 15
        %s363 = scalar_select %p362, %s361, 15
        %s364 = smul.addr %s363, 8
        %s365 = scalar_lea.vmem %s0, %s364
        %p366 = pneg %p54
        %p367 = pneg %p51
        %s368 = smul.u32 8, %s25
        %p369 = scmp.lt.s32.totalorder %s368, 15
        %s370 = scalar_select %p369, %s368, 15
        %s371 = smul.addr %s370, 8
        %s372 = scalar_lea.vmem %s1, %s371
        %p373 = pneg %p80
        %p374 = pneg %p77
        %s375 = smul.u32 8, %s25
        %p376 = scmp.lt.s32.totalorder %s26, 7
        %s377 = scalar_select %p376, %s26, 7
        %p378 = scmp.lt.s32.totalorder %s375, 15
        %s379 = scalar_select %p378, %s375, 15
        %s380 = smul.addr %s377, 16
        %s381 = sadd.s32 %s379, %s380
        %s382 = smul.addr %s381, 8
        %s383 = scalar_lea.vmem %s2, %s382
        %p384 = pneg %p108
        %p385 = pneg %p105
        %s386 = sand.u32 %s123, 1
        %s387 = sand.u32 %s123, 1
        %s388 = smul.addr %s387, 64
        %s389 = scalar_lea.vmem [#allocation6], %s388
        %p390 = pneg %p136
        %p391 = pneg %p133
        %p392 = pneg %p157
        %p393 = pneg %p154
        %p394 = pneg %p178
        %p395 = pneg %p175
        %p396 = pneg %p204
        %p397 = pneg %p201
        %s398 = sand.u32 %s191, 1
        %s399 = scalar_lea.sflag [#allocation9], %s398
        %s400 = sand.u32 %s191, 1
        %s401 = smul.addr %s400, 64
        %s402 = scalar_lea.vmem [#allocation10], %s401
        %s403 = smul.u32 8, %s25
        %p404 = scmp.lt.s32.totalorder %s403, 15
        %s405 = scalar_select %p404, %s403, 15
        %s406 = smul.addr %s405, 8
        %s407 = scalar_lea.vmem %s0, %s406
        %s408 = smul.u32 8, %s25
        %s409 = smul.u32 8, %s25
        %p410 = scmp.lt.s32.totalorder %s409, 15
        %s411 = scalar_select %p410, %s409, 15
        %s412 = smul.addr %s411, 8
        %s413 = scalar_lea.vmem %s1, %s412
        %s414 = smul.u32 8, %s25
        %s415 = smul.u32 8, %s25
        %p416 = scmp.lt.s32.totalorder %s26, 7
        %s417 = scalar_select %p416, %s26, 7
        %p418 = scmp.lt.s32.totalorder %s415, 15
        %s419 = scalar_select %p418, %s415, 15
        %s420 = smul.addr %s417, 16
        %s421 = sadd.s32 %s419, %s420
        %s422 = smul.addr %s421, 8
        %s423 = scalar_lea.vmem %s2, %s422
        %s424 = smul.u32 8, %s25
        %s425 = smul.u32 8, %s25
        %s426 = smul.u32 8, %s25
        %p427 = scmp.eq.s32.totalorder %s26, 0
        // Predicated region
        $region87: #{tpu_custom_call.1} parent=77 // pred_check
          %p428 = pneg %p427
        $region88: #{tpu_custom_call.1} parent=77 // pred_check_branch
          %430 = sbr.rel (%p428) target = $region90
        $region89: #{tpu_custom_call.1} parent=77 // pred_region
          %v431 = vld [vmem:[%s407] sm:$0xff]
          %v432 = vld [vmem:[%s407 + $0x8] sm:$0xff]
          %v433 = vld [vmem:[%s407 + $0x10] sm:$0xff]
          %v434 = vld [vmem:[%s407 + $0x18] sm:$0xff]
          %v435 = vld [vmem:[%s407 + $0x20] sm:$0xff]
          %v436 = vld [vmem:[%s407 + $0x28] sm:$0xff]
          %v437 = vld [vmem:[%s407 + $0x30] sm:$0xff]
          %v438 = vld [vmem:[%s407 + $0x38] sm:$0xff]
          %v439 = vld [vmem:[%s4] sm:$0x7]
          %v440 = vld [vmem:[%s413] sm:$0xff]
          %v441 = vld [vmem:[%s413 + $0x8] sm:$0xff]
          %v442 = vld [vmem:[%s413 + $0x10] sm:$0xff]
          %v443 = vld [vmem:[%s413 + $0x18] sm:$0xff]
          %v444 = vld [vmem:[%s413 + $0x20] sm:$0xff]
          %v445 = vld [vmem:[%s413 + $0x28] sm:$0xff]
          %v446 = vld [vmem:[%s413 + $0x30] sm:$0xff]
          %v447 = vld [vmem:[%s413 + $0x38] sm:$0xff]
          %v448 = vld [vmem:[#allocation7] sm:$0xff]
          %v449 = vld [vmem:[#allocation7 + $0x8] sm:$0xff]
          %v450 = vld [vmem:[#allocation7 + $0x10] sm:$0xff]
          %v451 = vld [vmem:[#allocation7 + $0x18] sm:$0xff]
          %v452 = vld [vmem:[#allocation7 + $0x20] sm:$0xff]
          %v453 = vld [vmem:[#allocation7 + $0x28] sm:$0xff]
          %v454 = vld [vmem:[#allocation7 + $0x30] sm:$0xff]
          %v455 = vld [vmem:[#allocation7 + $0x38] sm:$0xff]
          %v456 = vld [vmem:[#allocation7 + $0x40] sm:$0xff]
          %v457 = vld [vmem:[#allocation7 + $0x48] sm:$0xff]
          %v458 = vld [vmem:[#allocation7 + $0x50] sm:$0xff]
          %v459 = vld [vmem:[#allocation7 + $0x58] sm:$0xff]
          %v460 = vld [vmem:[#allocation7 + $0x60] sm:$0xff]
          %v461 = vld [vmem:[#allocation7 + $0x68] sm:$0xff]
          %v462 = vld [vmem:[#allocation7 + $0x70] sm:$0xff]
          %v463 = vld [vmem:[#allocation7 + $0x78] sm:$0xff]
          %464 = vmatprep.subr.mxu0 0.0
          %465 = vmatpush1.msra.mxu0 %v463
          %466 = vmatprep.subr.mxu0 0.0
          %467 = vmatpush1.msra.mxu0 %v462
          %468 = vmatprep.subr.mxu0 0.0
          %469 = vmatpush1.msra.mxu0 %v461
          %470 = vmatprep.subr.mxu0 0.0
          %471 = vmatpush1.msra.mxu0 %v460
          %472 = vmatprep.subr.mxu0 0.0
          %473 = vmatpush1.msra.mxu0 %v459
          %474 = vmatprep.subr.mxu0 0.0
          %475 = vmatpush1.msra.mxu0 %v458
          %476 = vmatprep.subr.mxu0 0.0
          %477 = vmatpush1.msra.mxu0 %v457
          %478 = vmatprep.subr.mxu0 0.0
          %479 = vmatpush1.msra.mxu0 %v456
          %480 = vmatprep.subr.mxu0 0.0
          %481 = vmatpush1.msra.mxu0 %v455
          %482 = vmatprep.subr.mxu0 0.0
          %483 = vmatpush1.msra.mxu0 %v454
          %484 = vmatprep.subr.mxu0 0.0
          %485 = vmatpush1.msra.mxu0 %v453
          %486 = vmatprep.subr.mxu0 0.0
          %487 = vmatpush1.msra.mxu0 %v452
          %488 = vmatprep.subr.mxu0 0.0
          %489 = vmatpush1.msra.mxu0 %v451
          %490 = vmatprep.subr.mxu0 0.0
          %491 = vmatpush1.msra.mxu0 %v450
          %492 = vmatprep.subr.mxu0 0.0
          %493 = vmatpush1.msra.mxu0 %v449
          %494 = vmatprep.subr.mxu0 0.0
          %495 = vmatpush1.msra.mxu0 %v448
          %496 = vmatprep.subr.mxu0 0.0
          %497 = vmatpush2.msra.mxu0 0.0
          %498 = vmatprep.subr.mxu0 0.0
          %499 = vmatpush2.msra.mxu0 0.0
          %500 = vmatprep.subr.mxu0 0.0
          %501 = vmatpush2.msra.mxu0 0.0
          %502 = vmatprep.subr.mxu0 0.0
          %503 = vmatpush2.msra.mxu0 0.0
          %504 = vmatprep.subr.mxu0 0.0
          %505 = vmatpush2.msra.mxu0 0.0
          %506 = vmatprep.subr.mxu0 0.0
          %507 = vmatpush2.msra.mxu0 0.0
          %508 = vmatprep.subr.mxu0 0.0
          %509 = vmatpush2.msra.mxu0 0.0
          %510 = vmatprep.subr.mxu0 0.0
          %511 = vmatpush2.msra.mxu0 0.0
          %512 = vmatprep.subr.mxu0 0.0
          %513 = vmatpush2.msra.mxu0 0.0
          %514 = vmatprep.subr.mxu0 0.0
          %515 = vmatpush2.msra.mxu0 0.0
          %516 = vmatprep.subr.mxu0 0.0
          %517 = vmatpush2.msra.mxu0 0.0
          %518 = vmatprep.subr.mxu0 0.0
          %519 = vmatpush2.msra.mxu0 0.0
          %520 = vmatprep.subr.mxu0 0.0
          %521 = vmatpush2.msra.mxu0 0.0
          %522 = vmatprep.subr.mxu0 0.0
          %523 = vmatpush2.msra.mxu0 0.0
          %524 = vmatprep.subr.mxu0 0.0
          %525 = vmatpush2.msra.mxu0 0.0
          %526 = vmatprep.subr.mxu0 0.0
          %527 = vmatpush2.msra.mxu0 0.0
          %528 = vmatprep.mubr.f32.mxu0 0.0
          %529 = vmatmul.mubr.f32.gmra.mxu0 %v440
          %v530 = vpop.f32.mrf.mxu0
          %v531 = vadd.f32 0.0, %v530
          %v532 = vpop.f32.mrf.mxu0
          %533 = vmatprep.mubr.f32.mxu0 0.0
          %534 = vmatmul.mubr.f32.gmra.mxu0 %v441
          %v535 = vpop.f32.mrf.mxu0
          %v536 = vadd.f32 0.0, %v535
          %v537 = vpop.f32.mrf.mxu0
          %538 = vmatprep.mubr.f32.mxu0 0.0
          %539 = vmatmul.mubr.f32.gmra.mxu0 %v442
          %v540 = vpop.f32.mrf.mxu0
          %v541 = vadd.f32 0.0, %v540
          %v542 = vpop.f32.mrf.mxu0
          %543 = vmatprep.mubr.f32.mxu0 0.0
          %544 = vmatmul.mubr.f32.gmra.mxu0 %v443
          %v545 = vpop.f32.mrf.mxu0
          %v546 = vadd.f32 0.0, %v545
          %v547 = vpop.f32.mrf.mxu0
          %548 = vmatprep.mubr.f32.mxu0 0.0
          %549 = vmatmul.mubr.f32.gmra.mxu0 %v444
          %v550 = vpop.f32.mrf.mxu0
          %v551 = vadd.f32 0.0, %v550
          %v552 = vpop.f32.mrf.mxu0
          %553 = vmatprep.mubr.f32.mxu0 0.0
          %554 = vmatmul.mubr.f32.gmra.mxu0 %v445
          %v555 = vpop.f32.mrf.mxu0
          %v556 = vadd.f32 0.0, %v555
          %v557 = vpop.f32.mrf.mxu0
          %558 = vmatprep.mubr.f32.mxu0 0.0
          %559 = vmatmul.mubr.f32.gmra.mxu0 %v446
          %v560 = vpop.f32.mrf.mxu0
          %v561 = vadd.f32 0.0, %v560
          %v562 = vpop.f32.mrf.mxu0
          %563 = vmatprep.mubr.f32.mxu0 0.0
          %564 = vmatmul.mubr.f32.gmra.mxu0 %v447
          %v565 = vpop.f32.mrf.mxu0
          %v566 = vadd.f32 0.0, %v565
          %v567 = vpop.f32.mrf.mxu0
          %568 = vdwg.mxu0
          %vm569 = vcmask 23552
          %v571 = vsel %vm569, %v431, 0
          %v574 = vsel %vm569, %v432, 0
          %v577 = vsel %vm569, %v433, 0
          %v580 = vsel %vm569, %v434, 0
          %v583 = vsel %vm569, %v435, 0
          %v586 = vsel %vm569, %v436, 0
          %v589 = vsel %vm569, %v437, 0
          %v592 = vsel %vm569, %v438, 0
          %vm594 = vcmask 1042432
          %v596 = vsel %vm594, %v439, 0
          %598 = vmatprep.subr.mxu0 0.0
          %599 = vmatpush1.msra.mxu0 0.0
          %600 = vmatprep.subr.mxu0 0.0
          %601 = vmatpush1.msra.mxu0 0.0
          %602 = vmatprep.subr.mxu0 0.0
          %603 = vmatpush1.msra.mxu0 0.0
          %604 = vmatprep.subr.mxu0 0.0
          %605 = vmatpush1.msra.mxu0 0.0
          %606 = vmatprep.subr.mxu0 0.0
          %607 = vmatpush1.msra.mxu0 0.0
          %608 = vmatprep.subr.mxu0 0.0
          %609 = vmatpush1.msra.mxu0 0.0
          %610 = vmatprep.subr.mxu0 0.0
          %611 = vmatpush1.msra.mxu0 0.0
          %612 = vmatprep.subr.mxu0 0.0
          %613 = vmatpush1.msra.mxu0 0.0
          %614 = vmatprep.subr.mxu0 0.0
          %615 = vmatpush1.msra.mxu0 0.0
          %616 = vmatprep.subr.mxu0 0.0
          %617 = vmatpush1.msra.mxu0 0.0
          %618 = vmatprep.subr.mxu0 0.0
          %619 = vmatpush1.msra.mxu0 0.0
          %620 = vmatprep.subr.mxu0 0.0
          %621 = vmatpush1.msra.mxu0 0.0
          %622 = vmatprep.subr.mxu0 0.0
          %623 = vmatpush1.msra.mxu0 0.0
          %624 = vmatprep.subr.mxu0 0.0
          %625 = vmatpush1.msra.mxu0 0.0
          %626 = vmatprep.subr.mxu0 0.0
          %627 = vmatpush1.msra.mxu0 0.0
          %628 = vmatprep.subr.mxu0 0.0
          %629 = vmatpush1.msra.mxu0 %v596
          %630 = vmatprep.subr.mxu0 0.0
          %631 = vmatpush2.msra.mxu0 0.0
          %632 = vmatprep.subr.mxu0 0.0
          %633 = vmatpush2.msra.mxu0 0.0
          %634 = vmatprep.subr.mxu0 0.0
          %635 = vmatpush2.msra.mxu0 0.0
          %636 = vmatprep.subr.mxu0 0.0
          %637 = vmatpush2.msra.mxu0 0.0
          %638 = vmatprep.subr.mxu0 0.0
          %639 = vmatpush2.msra.mxu0 0.0
          %640 = vmatprep.subr.mxu0 0.0
          %641 = vmatpush2.msra.mxu0 0.0
          %642 = vmatprep.subr.mxu0 0.0
          %643 = vmatpush2.msra.mxu0 0.0
          %644 = vmatprep.subr.mxu0 0.0
          %645 = vmatpush2.msra.mxu0 0.0
          %646 = vmatprep.subr.mxu0 0.0
          %647 = vmatpush2.msra.mxu0 0.0
          %648 = vmatprep.subr.mxu0 0.0
          %649 = vmatpush2.msra.mxu0 0.0
          %650 = vmatprep.subr.mxu0 0.0
          %651 = vmatpush2.msra.mxu0 0.0
          %652 = vmatprep.subr.mxu0 0.0
          %653 = vmatpush2.msra.mxu0 0.0
          %654 = vmatprep.subr.mxu0 0.0
          %655 = vmatpush2.msra.mxu0 0.0
          %656 = vmatprep.subr.mxu0 0.0
          %657 = vmatpush2.msra.mxu0 0.0
          %658 = vmatprep.subr.mxu0 0.0
          %659 = vmatpush2.msra.mxu0 0.0
          %660 = vmatprep.subr.mxu0 0.0
          %661 = vmatpush2.msra.mxu0 0.0
          %662 = vmatprep.mubr.f32.mxu0 0.0
          %663 = vmatmul.mubr.f32.gmra.mxu0 %v571
          %v664 = vpop.f32.mrf.mxu0
          %v665 = vadd.f32 %v531, %v664
          %v666 = vpop.f32.mrf.mxu0
          %667 = vmatprep.mubr.f32.mxu0 0.0
          %668 = vmatmul.mubr.f32.gmra.mxu0 %v574
          %v669 = vpop.f32.mrf.mxu0
          %v670 = vadd.f32 %v536, %v669
          %v671 = vpop.f32.mrf.mxu0
          %672 = vmatprep.mubr.f32.mxu0 0.0
          %673 = vmatmul.mubr.f32.gmra.mxu0 %v577
          %v674 = vpop.f32.mrf.mxu0
          %v675 = vadd.f32 %v541, %v674
          %v676 = vpop.f32.mrf.mxu0
          %677 = vmatprep.mubr.f32.mxu0 0.0
          %678 = vmatmul.mubr.f32.gmra.mxu0 %v580
          %v679 = vpop.f32.mrf.mxu0
          %v680 = vadd.f32 %v546, %v679
          %v681 = vpop.f32.mrf.mxu0
          %682 = vmatprep.mubr.f32.mxu0 0.0
          %683 = vmatmul.mubr.f32.gmra.mxu0 %v583
          %v684 = vpop.f32.mrf.mxu0
          %v685 = vadd.f32 %v551, %v684
          %v686 = vpop.f32.mrf.mxu0
          %687 = vmatprep.mubr.f32.mxu0 0.0
          %688 = vmatmul.mubr.f32.gmra.mxu0 %v586
          %v689 = vpop.f32.mrf.mxu0
          %v690 = vadd.f32 %v556, %v689
          %v691 = vpop.f32.mrf.mxu0
          %692 = vmatprep.mubr.f32.mxu0 0.0
          %693 = vmatmul.mubr.f32.gmra.mxu0 %v589
          %v694 = vpop.f32.mrf.mxu0
          %v695 = vadd.f32 %v561, %v694
          %v696 = vpop.f32.mrf.mxu0
          %697 = vmatprep.mubr.f32.mxu0 0.0
          %698 = vmatmul.mubr.f32.gmra.mxu0 %v592
          %v699 = vpop.f32.mrf.mxu0
          %v700 = vadd.f32 %v566, %v699
          %v701 = vpop.f32.mrf.mxu0
          %702 = vdwg.mxu0
          %703 = vst [vmem:[#allocation2] sm:$0xff] %v665
          %704 = vst [vmem:[#allocation2 + $0x8] sm:$0xff] %v670
          %705 = vst [vmem:[#allocation2 + $0x10] sm:$0xff] %v675
          %706 = vst [vmem:[#allocation2 + $0x18] sm:$0xff] %v680
          %707 = vst [vmem:[#allocation2 + $0x20] sm:$0xff] %v685
          %708 = vst [vmem:[#allocation2 + $0x28] sm:$0xff] %v690
          %709 = vst [vmem:[#allocation2 + $0x30] sm:$0xff] %v695
          %710 = vst [vmem:[#allocation2 + $0x38] sm:$0xff] %v700
          %711 = vst [vmem:[#allocation3] sm:$0xff] -inf
          %712 = vst [vmem:[#allocation3 + $0x8] sm:$0xff] -inf
          %713 = vst [vmem:[#allocation3 + $0x10] sm:$0xff] -inf
          %714 = vst [vmem:[#allocation3 + $0x18] sm:$0xff] -inf
          %715 = vst [vmem:[#allocation3 + $0x20] sm:$0xff] -inf
          %716 = vst [vmem:[#allocation3 + $0x28] sm:$0xff] -inf
          %717 = vst [vmem:[#allocation3 + $0x30] sm:$0xff] -inf
          %718 = vst [vmem:[#allocation3 + $0x38] sm:$0xff] -inf
          %719 = vst [vmem:[#allocation4] sm:$0xff] 0.0
          %720 = vst [vmem:[#allocation4 + $0x8] sm:$0xff] 0.0
          %721 = vst [vmem:[#allocation4 + $0x10] sm:$0xff] 0.0
          %722 = vst [vmem:[#allocation4 + $0x18] sm:$0xff] 0.0
          %723 = vst [vmem:[#allocation4 + $0x20] sm:$0xff] 0.0
          %724 = vst [vmem:[#allocation4 + $0x28] sm:$0xff] 0.0
          %725 = vst [vmem:[#allocation4 + $0x30] sm:$0xff] 0.0
          %726 = vst [vmem:[#allocation4 + $0x38] sm:$0xff] 0.0
          %727 = vst [vmem:[#allocation5] sm:$0xff] 0.0
          %728 = vst [vmem:[#allocation5 + $0x8] sm:$0xff] 0.0
          %729 = vst [vmem:[#allocation5 + $0x10] sm:$0xff] 0.0
          %730 = vst [vmem:[#allocation5 + $0x18] sm:$0xff] 0.0
          %731 = vst [vmem:[#allocation5 + $0x20] sm:$0xff] 0.0
          %732 = vst [vmem:[#allocation5 + $0x28] sm:$0xff] 0.0
          %733 = vst [vmem:[#allocation5 + $0x30] sm:$0xff] 0.0
          %734 = vst [vmem:[#allocation5 + $0x38] sm:$0xff] 0.0
        $region90: #{tpu_custom_call.1} parent=77 // pred_fallthru
          _
        %v735 = vld [vmem:[%s423] sm:$0xff]
        %v736 = vld [vmem:[%s423 + $0x8] sm:$0xff]
        %v737 = vld [vmem:[%s423 + $0x10] sm:$0xff]
        %v738 = vld [vmem:[%s423 + $0x18] sm:$0xff]
        %v739 = vld [vmem:[%s423 + $0x20] sm:$0xff]
        %v740 = vld [vmem:[%s423 + $0x28] sm:$0xff]
        %v741 = vld [vmem:[%s423 + $0x30] sm:$0xff]
        %v742 = vld [vmem:[%s423 + $0x38] sm:$0xff]
        %v743 = vld [vmem:[%s4] sm:$0x7]
        %v744 = vld [vmem:[%s353] sm:$0xff]
        %v745 = vld [vmem:[%s353 + $0x8] sm:$0xff]
        %v746 = vld [vmem:[%s353 + $0x10] sm:$0xff]
        %v747 = vld [vmem:[%s353 + $0x18] sm:$0xff]
        %v748 = vld [vmem:[%s353 + $0x20] sm:$0xff]
        %v749 = vld [vmem:[%s353 + $0x28] sm:$0xff]
        %v750 = vld [vmem:[%s353 + $0x30] sm:$0xff]
        %v751 = vld [vmem:[%s353 + $0x38] sm:$0xff]
        %v752 = vld [vmem:[#allocation7] sm:$0xff]
        %v753 = vld [vmem:[#allocation7 + $0x8] sm:$0xff]
        %v754 = vld [vmem:[#allocation7 + $0x10] sm:$0xff]
        %v755 = vld [vmem:[#allocation7 + $0x18] sm:$0xff]
        %v756 = vld [vmem:[#allocation7 + $0x20] sm:$0xff]
        %v757 = vld [vmem:[#allocation7 + $0x28] sm:$0xff]
        %v758 = vld [vmem:[#allocation7 + $0x30] sm:$0xff]
        %v759 = vld [vmem:[#allocation7 + $0x38] sm:$0xff]
        %v760 = vld [vmem:[#allocation7 + $0x40] sm:$0xff]
        %v761 = vld [vmem:[#allocation7 + $0x48] sm:$0xff]
        %v762 = vld [vmem:[#allocation7 + $0x50] sm:$0xff]
        %v763 = vld [vmem:[#allocation7 + $0x58] sm:$0xff]
        %v764 = vld [vmem:[#allocation7 + $0x60] sm:$0xff]
        %v765 = vld [vmem:[#allocation7 + $0x68] sm:$0xff]
        %v766 = vld [vmem:[#allocation7 + $0x70] sm:$0xff]
        %v767 = vld [vmem:[#allocation7 + $0x78] sm:$0xff]
        %768 = vmatprep.subr.mxu0 0.0
        %769 = vmatpush1.msra.mxu0 %v767
        %770 = vmatprep.subr.mxu0 0.0
        %771 = vmatpush1.msra.mxu0 %v766
        %772 = vmatprep.subr.mxu0 0.0
        %773 = vmatpush1.msra.mxu0 %v765
        %774 = vmatprep.subr.mxu0 0.0
        %775 = vmatpush1.msra.mxu0 %v764
        %776 = vmatprep.subr.mxu0 0.0
        %777 = vmatpush1.msra.mxu0 %v763
        %778 = vmatprep.subr.mxu0 0.0
        %779 = vmatpush1.msra.mxu0 %v762
        %780 = vmatprep.subr.mxu0 0.0
        %781 = vmatpush1.msra.mxu0 %v761
        %782 = vmatprep.subr.mxu0 0.0
        %783 = vmatpush1.msra.mxu0 %v760
        %784 = vmatprep.subr.mxu0 0.0
        %785 = vmatpush1.msra.mxu0 %v759
        %786 = vmatprep.subr.mxu0 0.0
        %787 = vmatpush1.msra.mxu0 %v758
        %788 = vmatprep.subr.mxu0 0.0
        %789 = vmatpush1.msra.mxu0 %v757
        %790 = vmatprep.subr.mxu0 0.0
        %791 = vmatpush1.msra.mxu0 %v756
        %792 = vmatprep.subr.mxu0 0.0
        %793 = vmatpush1.msra.mxu0 %v755
        %794 = vmatprep.subr.mxu0 0.0
        %795 = vmatpush1.msra.mxu0 %v754
        %796 = vmatprep.subr.mxu0 0.0
        %797 = vmatpush1.msra.mxu0 %v753
        %798 = vmatprep.subr.mxu0 0.0
        %799 = vmatpush1.msra.mxu0 %v752
        %800 = vmatprep.subr.mxu0 0.0
        %801 = vmatpush2.msra.mxu0 0.0
        %802 = vmatprep.subr.mxu0 0.0
        %803 = vmatpush2.msra.mxu0 0.0
        %804 = vmatprep.subr.mxu0 0.0
        %805 = vmatpush2.msra.mxu0 0.0
        %806 = vmatprep.subr.mxu0 0.0
        %807 = vmatpush2.msra.mxu0 0.0
        %808 = vmatprep.subr.mxu0 0.0
        %809 = vmatpush2.msra.mxu0 0.0
        %810 = vmatprep.subr.mxu0 0.0
        %811 = vmatpush2.msra.mxu0 0.0
        %812 = vmatprep.subr.mxu0 0.0
        %813 = vmatpush2.msra.mxu0 0.0
        %814 = vmatprep.subr.mxu0 0.0
        %815 = vmatpush2.msra.mxu0 0.0
        %816 = vmatprep.subr.mxu0 0.0
        %817 = vmatpush2.msra.mxu0 0.0
        %818 = vmatprep.subr.mxu0 0.0
        %819 = vmatpush2.msra.mxu0 0.0
        %820 = vmatprep.subr.mxu0 0.0
        %821 = vmatpush2.msra.mxu0 0.0
        %822 = vmatprep.subr.mxu0 0.0
        %823 = vmatpush2.msra.mxu0 0.0
        %824 = vmatprep.subr.mxu0 0.0
        %825 = vmatpush2.msra.mxu0 0.0
        %826 = vmatprep.subr.mxu0 0.0
        %827 = vmatpush2.msra.mxu0 0.0
        %828 = vmatprep.subr.mxu0 0.0
        %829 = vmatpush2.msra.mxu0 0.0
        %830 = vmatprep.subr.mxu0 0.0
        %831 = vmatpush2.msra.mxu0 0.0
        %832 = vmatprep.mubr.f32.mxu0 0.0
        %833 = vmatmul.mubr.f32.gmra.mxu0 %v744
        %v834 = vpop.f32.mrf.mxu0
        %v835 = vadd.f32 0.0, %v834
        %v836 = vpop.f32.mrf.mxu0
        %837 = vmatprep.mubr.f32.mxu0 0.0
        %838 = vmatmul.mubr.f32.gmra.mxu0 %v745
        %v839 = vpop.f32.mrf.mxu0
        %v840 = vadd.f32 0.0, %v839
        %v841 = vpop.f32.mrf.mxu0
        %842 = vmatprep.mubr.f32.mxu0 0.0
        %843 = vmatmul.mubr.f32.gmra.mxu0 %v746
        %v844 = vpop.f32.mrf.mxu0
        %v845 = vadd.f32 0.0, %v844
        %v846 = vpop.f32.mrf.mxu0
        %847 = vmatprep.mubr.f32.mxu0 0.0
        %848 = vmatmul.mubr.f32.gmra.mxu0 %v747
        %v849 = vpop.f32.mrf.mxu0
        %v850 = vadd.f32 0.0, %v849
        %v851 = vpop.f32.mrf.mxu0
        %852 = vmatprep.mubr.f32.mxu0 0.0
        %853 = vmatmul.mubr.f32.gmra.mxu0 %v748
        %v854 = vpop.f32.mrf.mxu0
        %v855 = vadd.f32 0.0, %v854
        %v856 = vpop.f32.mrf.mxu0
        %857 = vmatprep.mubr.f32.mxu0 0.0
        %858 = vmatmul.mubr.f32.gmra.mxu0 %v749
        %v859 = vpop.f32.mrf.mxu0
        %v860 = vadd.f32 0.0, %v859
        %v861 = vpop.f32.mrf.mxu0
        %862 = vmatprep.mubr.f32.mxu0 0.0
        %863 = vmatmul.mubr.f32.gmra.mxu0 %v750
        %v864 = vpop.f32.mrf.mxu0
        %v865 = vadd.f32 0.0, %v864
        %v866 = vpop.f32.mrf.mxu0
        %867 = vmatprep.mubr.f32.mxu0 0.0
        %868 = vmatmul.mubr.f32.gmra.mxu0 %v751
        %v869 = vpop.f32.mrf.mxu0
        %v870 = vadd.f32 0.0, %v869
        %v871 = vpop.f32.mrf.mxu0
        %872 = vdwg.mxu0
        %vm873 = vcmask 23552
        %v875 = vsel %vm873, %v735, 0
        %v878 = vsel %vm873, %v736, 0
        %v881 = vsel %vm873, %v737, 0
        %v884 = vsel %vm873, %v738, 0
        %v887 = vsel %vm873, %v739, 0
        %v890 = vsel %vm873, %v740, 0
        %v893 = vsel %vm873, %v741, 0
        %v896 = vsel %vm873, %v742, 0
        %vm898 = vcmask 1042432
        %v900 = vsel %vm898, %v743, 0
        %902 = vmatprep.subr.mxu0 0.0
        %903 = vmatpush1.msra.mxu0 0.0
        %904 = vmatprep.subr.mxu0 0.0
        %905 = vmatpush1.msra.mxu0 0.0
        %906 = vmatprep.subr.mxu0 0.0
        %907 = vmatpush1.msra.mxu0 0.0
        %908 = vmatprep.subr.mxu0 0.0
        %909 = vmatpush1.msra.mxu0 0.0
        %910 = vmatprep.subr.mxu0 0.0
        %911 = vmatpush1.msra.mxu0 0.0
        %912 = vmatprep.subr.mxu0 0.0
        %913 = vmatpush1.msra.mxu0 0.0
        %914 = vmatprep.subr.mxu0 0.0
        %915 = vmatpush1.msra.mxu0 0.0
        %916 = vmatprep.subr.mxu0 0.0
        %917 = vmatpush1.msra.mxu0 0.0
        %918 = vmatprep.subr.mxu0 0.0
        %919 = vmatpush1.msra.mxu0 0.0
        %920 = vmatprep.subr.mxu0 0.0
        %921 = vmatpush1.msra.mxu0 0.0
        %922 = vmatprep.subr.mxu0 0.0
        %923 = vmatpush1.msra.mxu0 0.0
        %924 = vmatprep.subr.mxu0 0.0
        %925 = vmatpush1.msra.mxu0 0.0
        %926 = vmatprep.subr.mxu0 0.0
        %927 = vmatpush1.msra.mxu0 0.0
        %928 = vmatprep.subr.mxu0 0.0
        %929 = vmatpush1.msra.mxu0 0.0
        %930 = vmatprep.subr.mxu0 0.0
        %931 = vmatpush1.msra.mxu0 0.0
        %932 = vmatprep.subr.mxu0 0.0
        %933 = vmatpush1.msra.mxu0 %v900
        %934 = vmatprep.subr.mxu0 0.0
        %935 = vmatpush2.msra.mxu0 0.0
        %936 = vmatprep.subr.mxu0 0.0
        %937 = vmatpush2.msra.mxu0 0.0
        %938 = vmatprep.subr.mxu0 0.0
        %939 = vmatpush2.msra.mxu0 0.0
        %940 = vmatprep.subr.mxu0 0.0
        %941 = vmatpush2.msra.mxu0 0.0
        %942 = vmatprep.subr.mxu0 0.0
        %943 = vmatpush2.msra.mxu0 0.0
        %944 = vmatprep.subr.mxu0 0.0
        %945 = vmatpush2.msra.mxu0 0.0
        %946 = vmatprep.subr.mxu0 0.0
        %947 = vmatpush2.msra.mxu0 0.0
        %948 = vmatprep.subr.mxu0 0.0
        %949 = vmatpush2.msra.mxu0 0.0
        %950 = vmatprep.subr.mxu0 0.0
        %951 = vmatpush2.msra.mxu0 0.0
        %952 = vmatprep.subr.mxu0 0.0
        %953 = vmatpush2.msra.mxu0 0.0
        %954 = vmatprep.subr.mxu0 0.0
        %955 = vmatpush2.msra.mxu0 0.0
        %956 = vmatprep.subr.mxu0 0.0
        %957 = vmatpush2.msra.mxu0 0.0
        %958 = vmatprep.subr.mxu0 0.0
        %959 = vmatpush2.msra.mxu0 0.0
        %960 = vmatprep.subr.mxu0 0.0
        %961 = vmatpush2.msra.mxu0 0.0
        %962 = vmatprep.subr.mxu0 0.0
        %963 = vmatpush2.msra.mxu0 0.0
        %964 = vmatprep.subr.mxu0 0.0
        %965 = vmatpush2.msra.mxu0 0.0
        %966 = vmatprep.mubr.f32.mxu0 0.0
        %967 = vmatmul.mubr.f32.gmra.mxu0 %v875
        %v968 = vpop.f32.mrf.mxu0
        %v969 = vadd.f32 %v835, %v968
        %v970 = vpop.f32.mrf.mxu0
        %971 = vmatprep.mubr.f32.mxu0 0.0
        %972 = vmatmul.mubr.f32.gmra.mxu0 %v878
        %v973 = vpop.f32.mrf.mxu0
        %v974 = vadd.f32 %v840, %v973
        %v975 = vpop.f32.mrf.mxu0
        %976 = vmatprep.mubr.f32.mxu0 0.0
        %977 = vmatmul.mubr.f32.gmra.mxu0 %v881
        %v978 = vpop.f32.mrf.mxu0
        %v979 = vadd.f32 %v845, %v978
        %v980 = vpop.f32.mrf.mxu0
        %981 = vmatprep.mubr.f32.mxu0 0.0
        %982 = vmatmul.mubr.f32.gmra.mxu0 %v884
        %v983 = vpop.f32.mrf.mxu0
        %v984 = vadd.f32 %v850, %v983
        %v985 = vpop.f32.mrf.mxu0
        %986 = vmatprep.mubr.f32.mxu0 0.0
        %987 = vmatmul.mubr.f32.gmra.mxu0 %v887
        %v988 = vpop.f32.mrf.mxu0
        %v989 = vadd.f32 %v855, %v988
        %v990 = vpop.f32.mrf.mxu0
        %991 = vmatprep.mubr.f32.mxu0 0.0
        %992 = vmatmul.mubr.f32.gmra.mxu0 %v890
        %v993 = vpop.f32.mrf.mxu0
        %v994 = vadd.f32 %v860, %v993
        %v995 = vpop.f32.mrf.mxu0
        %996 = vmatprep.mubr.f32.mxu0 0.0
        %997 = vmatmul.mubr.f32.gmra.mxu0 %v893
        %v998 = vpop.f32.mrf.mxu0
        %v999 = vadd.f32 %v865, %v998
        %v1000 = vpop.f32.mrf.mxu0
        %1001 = vmatprep.mubr.f32.mxu0 0.0
        %1002 = vmatmul.mubr.f32.gmra.mxu0 %v896
        %v1003 = vpop.f32.mrf.mxu0
        %v1004 = vadd.f32 %v870, %v1003
        %v1005 = vpop.f32.mrf.mxu0
        %1006 = vdwg.mxu0
        %v1007 = vld [vmem:[#allocation2] sm:$0xff]
        %v1008 = vld [vmem:[#allocation2 + $0x8] sm:$0xff]
        %v1009 = vld [vmem:[#allocation2 + $0x10] sm:$0xff]
        %v1010 = vld [vmem:[#allocation2 + $0x18] sm:$0xff]
        %v1011 = vld [vmem:[#allocation2 + $0x20] sm:$0xff]
        %v1012 = vld [vmem:[#allocation2 + $0x28] sm:$0xff]
        %v1013 = vld [vmem:[#allocation2 + $0x30] sm:$0xff]
        %v1014 = vld [vmem:[#allocation2 + $0x38] sm:$0xff]
        %v1015 = vsub.f32 %v1007, %v969
        %v1016 = vsub.f32 %v1008, %v974
        %v1017 = vsub.f32 %v1009, %v979
        %v1018 = vsub.f32 %v1010, %v984
        %v1019 = vsub.f32 %v1011, %v989
        %v1020 = vsub.f32 %v1012, %v994
        %v1021 = vsub.f32 %v1013, %v999
        %v1022 = vsub.f32 %v1014, %v1004
        %vm1023 = vcmp.ge.f32.partialorder %v1015, 0.0
        %vm1024 = vcmp.ge.f32.partialorder %v1016, 0.0
        %vm1025 = vcmp.ge.f32.partialorder %v1017, 0.0
        %vm1026 = vcmp.ge.f32.partialorder %v1018, 0.0
        %vm1027 = vcmp.ge.f32.partialorder %v1019, 0.0
        %vm1028 = vcmp.ge.f32.partialorder %v1020, 0.0
        %vm1029 = vcmp.ge.f32.partialorder %v1021, 0.0
        %vm1030 = vcmp.ge.f32.partialorder %v1022, 0.0
        %v1031 = vmul.f32 %v1015, 0.2
        %v1032 = vmul.f32 %v1016, 0.2
        %v1033 = vmul.f32 %v1017, 0.2
        %v1034 = vmul.f32 %v1018, 0.2
        %v1035 = vmul.f32 %v1019, 0.2
        %v1036 = vmul.f32 %v1020, 0.2
        %v1037 = vmul.f32 %v1021, 0.2
        %v1038 = vmul.f32 %v1022, 0.2
        %v1039 = vsel %vm1023, %v1015, %v1031
        %v1040 = vsel %vm1024, %v1016, %v1032
        %v1041 = vsel %vm1025, %v1017, %v1033
        %v1042 = vsel %vm1026, %v1018, %v1034
        %v1043 = vsel %vm1027, %v1019, %v1035
        %v1044 = vsel %vm1028, %v1020, %v1036
        %v1045 = vsel %vm1029, %v1021, %v1037
        %v1046 = vsel %vm1030, %v1022, %v1038
        %v1047 = vld [vmem:[#allocation3] sm:$0xff]
        %v1048 = vld [vmem:[#allocation3 + $0x8] sm:$0xff]
        %v1049 = vld [vmem:[#allocation3 + $0x10] sm:$0xff]
        %v1050 = vld [vmem:[#allocation3 + $0x18] sm:$0xff]
        %v1051 = vld [vmem:[#allocation3 + $0x20] sm:$0xff]
        %v1052 = vld [vmem:[#allocation3 + $0x28] sm:$0xff]
        %v1053 = vld [vmem:[#allocation3 + $0x30] sm:$0xff]
        %v1054 = vld [vmem:[#allocation3 + $0x38] sm:$0xff]
        %v1055 = vmax.f32 %v1047, %v1039
        %v1056 = vmax.f32 %v1048, %v1040
        %v1057 = vmax.f32 %v1049, %v1041
        %v1058 = vmax.f32 %v1050, %v1042
        %v1059 = vmax.f32 %v1051, %v1043
        %v1060 = vmax.f32 %v1052, %v1044
        %v1061 = vmax.f32 %v1053, %v1045
        %v1062 = vmax.f32 %v1054, %v1046
        %v1063 = vsub.f32 %v1047, %v1055
        %v1064 = vsub.f32 %v1048, %v1056
        %v1065 = vsub.f32 %v1049, %v1057
        %v1066 = vsub.f32 %v1050, %v1058
        %v1067 = vsub.f32 %v1051, %v1059
        %v1068 = vsub.f32 %v1052, %v1060
        %v1069 = vsub.f32 %v1053, %v1061
        %v1070 = vsub.f32 %v1054, %v1062
        %v1071 = vmul.f32 %v1063, 1.442695
        %v1072 = vpow.pop %v1071
        %v1073 = vmul.f32 %v1064, 1.442695
        %v1074 = vpow.pop %v1073
        %v1075 = vmul.f32 %v1065, 1.442695
        %v1076 = vpow.pop %v1075
        %v1077 = vmul.f32 %v1066, 1.442695
        %v1078 = vpow.pop %v1077
        %v1079 = vmul.f32 %v1067, 1.442695
        %v1080 = vpow.pop %v1079
        %v1081 = vmul.f32 %v1068, 1.442695
        %v1082 = vpow.pop %v1081
        %v1083 = vmul.f32 %v1069, 1.442695
        %v1084 = vpow.pop %v1083
        %v1085 = vmul.f32 %v1070, 1.442695
        %v1086 = vpow.pop %v1085
        %v1087 = vsub.f32 %v1039, %v1055
        %v1088 = vsub.f32 %v1040, %v1056
        %v1089 = vsub.f32 %v1041, %v1057
        %v1090 = vsub.f32 %v1042, %v1058
        %v1091 = vsub.f32 %v1043, %v1059
        %v1092 = vsub.f32 %v1044, %v1060
        %v1093 = vsub.f32 %v1045, %v1061
        %v1094 = vsub.f32 %v1046, %v1062
        %v1095 = vmul.f32 %v1087, 1.442695
        %v1096 = vpow.pop %v1095
        %v1097 = vmul.f32 %v1088, 1.442695
        %v1098 = vpow.pop %v1097
        %v1099 = vmul.f32 %v1089, 1.442695
        %v1100 = vpow.pop %v1099
        %v1101 = vmul.f32 %v1090, 1.442695
        %v1102 = vpow.pop %v1101
        %v1103 = vmul.f32 %v1091, 1.442695
        %v1104 = vpow.pop %v1103
        %v1105 = vmul.f32 %v1092, 1.442695
        %v1106 = vpow.pop %v1105
        %v1107 = vmul.f32 %v1093, 1.442695
        %v1108 = vpow.pop %v1107
        %v1109 = vmul.f32 %v1094, 1.442695
        %v1110 = vpow.pop %v1109
        %v1111 = vld [vmem:[#allocation4] sm:$0xff]
        %v1112 = vld [vmem:[#allocation4 + $0x8] sm:$0xff]
        %v1113 = vld [vmem:[#allocation4 + $0x10] sm:$0xff]
        %v1114 = vld [vmem:[#allocation4 + $0x18] sm:$0xff]
        %v1115 = vld [vmem:[#allocation4 + $0x20] sm:$0xff]
        %v1116 = vld [vmem:[#allocation4 + $0x28] sm:$0xff]
        %v1117 = vld [vmem:[#allocation4 + $0x30] sm:$0xff]
        %v1118 = vld [vmem:[#allocation4 + $0x38] sm:$0xff]
        %v1119 = vmul.f32 %v1111, %v1072
        %v1120 = vmul.f32 %v1112, %v1074
        %v1121 = vmul.f32 %v1113, %v1076
        %v1122 = vmul.f32 %v1114, %v1078
        %v1123 = vmul.f32 %v1115, %v1080
        %v1124 = vmul.f32 %v1116, %v1082
        %v1125 = vmul.f32 %v1117, %v1084
        %v1126 = vmul.f32 %v1118, %v1086
        %v1127 = vadd.f32 %v1119, %v1096
        %v1128 = vadd.f32 %v1120, %v1098
        %v1129 = vadd.f32 %v1121, %v1100
        %v1130 = vadd.f32 %v1122, %v1102
        %v1131 = vadd.f32 %v1123, %v1104
        %v1132 = vadd.f32 %v1124, %v1106
        %v1133 = vadd.f32 %v1125, %v1108
        %v1134 = vadd.f32 %v1126, %v1110
        %1135 = vst [vmem:[#allocation4] sm:$0xff] %v1127
        %1136 = vst [vmem:[#allocation4 + $0x8] sm:$0xff] %v1128
        %1137 = vst [vmem:[#allocation4 + $0x10] sm:$0xff] %v1129
        %1138 = vst [vmem:[#allocation4 + $0x18] sm:$0xff] %v1130
        %1139 = vst [vmem:[#allocation4 + $0x20] sm:$0xff] %v1131
        %1140 = vst [vmem:[#allocation4 + $0x28] sm:$0xff] %v1132
        %1141 = vst [vmem:[#allocation4 + $0x30] sm:$0xff] %v1133
        %1142 = vst [vmem:[#allocation4 + $0x38] sm:$0xff] %v1134
        %v1143 = vld [vmem:[#allocation5] sm:$0xff]
        %v1144 = vld [vmem:[#allocation5 + $0x8] sm:$0xff]
        %v1145 = vld [vmem:[#allocation5 + $0x10] sm:$0xff]
        %v1146 = vld [vmem:[#allocation5 + $0x18] sm:$0xff]
        %v1147 = vld [vmem:[#allocation5 + $0x20] sm:$0xff]
        %v1148 = vld [vmem:[#allocation5 + $0x28] sm:$0xff]
        %v1149 = vld [vmem:[#allocation5 + $0x30] sm:$0xff]
        %v1150 = vld [vmem:[#allocation5 + $0x38] sm:$0xff]
        %v1151 = vmul.f32 %v1143, %v1072
        %v1152 = vmul.f32 %v1144, %v1074
        %v1153 = vmul.f32 %v1145, %v1076
        %v1154 = vmul.f32 %v1146, %v1078
        %v1155 = vmul.f32 %v1147, %v1080
        %v1156 = vmul.f32 %v1148, %v1082
        %v1157 = vmul.f32 %v1149, %v1084
        %v1158 = vmul.f32 %v1150, %v1086
        %v1159 = vld [vmem:[%s353] sm:$0xff]
        %v1160 = vld [vmem:[%s353 + $0x8] sm:$0xff]
        %v1161 = vld [vmem:[%s353 + $0x10] sm:$0xff]
        %v1162 = vld [vmem:[%s353 + $0x18] sm:$0xff]
        %v1163 = vld [vmem:[%s353 + $0x20] sm:$0xff]
        %v1164 = vld [vmem:[%s353 + $0x28] sm:$0xff]
        %v1165 = vld [vmem:[%s353 + $0x30] sm:$0xff]
        %v1166 = vld [vmem:[%s353 + $0x38] sm:$0xff]
        %v1167 = vmul.f32 %v1096, %v1159
        %v1168 = vmul.f32 %v1098, %v1160
        %v1169 = vmul.f32 %v1100, %v1161
        %v1170 = vmul.f32 %v1102, %v1162
        %v1171 = vmul.f32 %v1104, %v1163
        %v1172 = vmul.f32 %v1106, %v1164
        %v1173 = vmul.f32 %v1108, %v1165
        %v1174 = vmul.f32 %v1110, %v1166
        %v1175 = vadd.f32 %v1151, %v1167
        %v1176 = vadd.f32 %v1152, %v1168
        %v1177 = vadd.f32 %v1153, %v1169
        %v1178 = vadd.f32 %v1154, %v1170
        %v1179 = vadd.f32 %v1155, %v1171
        %v1180 = vadd.f32 %v1156, %v1172
        %v1181 = vadd.f32 %v1157, %v1173
        %v1182 = vadd.f32 %v1158, %v1174
        %1183 = vst [vmem:[#allocation5] sm:$0xff] %v1175
        %1184 = vst [vmem:[#allocation5 + $0x8] sm:$0xff] %v1176
        %1185 = vst [vmem:[#allocation5 + $0x10] sm:$0xff] %v1177
        %1186 = vst [vmem:[#allocation5 + $0x18] sm:$0xff] %v1178
        %1187 = vst [vmem:[#allocation5 + $0x20] sm:$0xff] %v1179
        %1188 = vst [vmem:[#allocation5 + $0x28] sm:$0xff] %v1180
        %1189 = vst [vmem:[#allocation5 + $0x30] sm:$0xff] %v1181
        %1190 = vst [vmem:[#allocation5 + $0x38] sm:$0xff] %v1182
        %1191 = vst [vmem:[#allocation3] sm:$0xff] %v1055
        %1192 = vst [vmem:[#allocation3 + $0x8] sm:$0xff] %v1056
        %1193 = vst [vmem:[#allocation3 + $0x10] sm:$0xff] %v1057
        %1194 = vst [vmem:[#allocation3 + $0x18] sm:$0xff] %v1058
        %1195 = vst [vmem:[#allocation3 + $0x20] sm:$0xff] %v1059
        %1196 = vst [vmem:[#allocation3 + $0x28] sm:$0xff] %v1060
        %1197 = vst [vmem:[#allocation3 + $0x30] sm:$0xff] %v1061
        %1198 = vst [vmem:[#allocation3 + $0x38] sm:$0xff] %v1062
        %p1199 = scmp.eq.s32.totalorder %s26, 7
        // Predicated region
        $region91: #{tpu_custom_call.1} parent=77 // pred_check
          %p1200 = pneg %p1199
        $region92: #{tpu_custom_call.1} parent=77 // pred_check_branch
          %1202 = sbr.rel (%p1200) target = $region94
        $region93: #{tpu_custom_call.1} parent=77 // pred_region
          %v1203 = vld [vmem:[#allocation5] sm:$0xff]
          %v1204 = vld [vmem:[#allocation5 + $0x8] sm:$0xff]
          %v1205 = vld [vmem:[#allocation5 + $0x10] sm:$0xff]
          %v1206 = vld [vmem:[#allocation5 + $0x18] sm:$0xff]
          %v1207 = vld [vmem:[#allocation5 + $0x20] sm:$0xff]
          %v1208 = vld [vmem:[#allocation5 + $0x28] sm:$0xff]
          %v1209 = vld [vmem:[#allocation5 + $0x30] sm:$0xff]
          %v1210 = vld [vmem:[#allocation5 + $0x38] sm:$0xff]
          %v1211 = vld [vmem:[#allocation4] sm:$0xff]
          %v1212 = vld [vmem:[#allocation4 + $0x8] sm:$0xff]
          %v1213 = vld [vmem:[#allocation4 + $0x10] sm:$0xff]
          %v1214 = vld [vmem:[#allocation4 + $0x18] sm:$0xff]
          %v1215 = vld [vmem:[#allocation4 + $0x20] sm:$0xff]
          %v1216 = vld [vmem:[#allocation4 + $0x28] sm:$0xff]
          %v1217 = vld [vmem:[#allocation4 + $0x30] sm:$0xff]
          %v1218 = vld [vmem:[#allocation4 + $0x38] sm:$0xff]
          %v1219 = vrcp.pop %v1211
          %v1220 = vrcp.pop %v1212
          %v1221 = vrcp.pop %v1213
          %v1222 = vrcp.pop %v1214
          %v1223 = vrcp.pop %v1215
          %v1224 = vrcp.pop %v1216
          %v1225 = vrcp.pop %v1217
          %v1226 = vrcp.pop %v1218
          %v1227 = vmul.f32 %v1203, %v1219
          %v1228 = vmul.f32 %v1204, %v1220
          %v1229 = vmul.f32 %v1205, %v1221
          %v1230 = vmul.f32 %v1206, %v1222
          %v1231 = vmul.f32 %v1207, %v1223
          %v1232 = vmul.f32 %v1208, %v1224
          %v1233 = vmul.f32 %v1209, %v1225
          %v1234 = vmul.f32 %v1210, %v1226
          %1235 = vst [vmem:[%s402] sm:$0xff] %v1227
          %1236 = vst [vmem:[%s402 + $0x8] sm:$0xff] %v1228
          %1237 = vst [vmem:[%s402 + $0x10] sm:$0xff] %v1229
          %1238 = vst [vmem:[%s402 + $0x18] sm:$0xff] %v1230
          %1239 = vst [vmem:[%s402 + $0x20] sm:$0xff] %v1231
          %1240 = vst [vmem:[%s402 + $0x28] sm:$0xff] %v1232
          %1241 = vst [vmem:[%s402 + $0x30] sm:$0xff] %v1233
          %1242 = vst [vmem:[%s402 + $0x38] sm:$0xff] %v1234
        $region94: #{tpu_custom_call.1} parent=77 // pred_fallthru
          _
        %s1243 = sand.u32 %s191, 1
        %s1244 = scalar_lea.sflag [#allocation9], %s1243
        %s1245 = sand.u32 %s191, 1
        %s1246 = smul.addr %s1245, 64
        %s1247 = scalar_lea.vmem [#allocation10], %s1246
        // Predicated region
        $region95: #{tpu_custom_call.1} parent=77 // pred_check
          %p1248 = pneg %p201
        $region96: #{tpu_custom_call.1} parent=77 // pred_check_branch
          %1250 = sbr.rel (%p1248) target = $region98
        $region97: #{tpu_custom_call.1} parent=77 // pred_region
          %s1251 = smul.u32 8, %s25
          %s1253 = ssub.s32 1024, 1024
          %1254 = vsyncadd %s1244, %s1253
          %s1255 = smul.addr %s1251, 128
          %s1256 = scalar_lea.hbm %s6, %s1255
          %s1257 = sshll.u32 %s1247, 4
          %s1258 = int_to_ptr.vmem [resolvable:$true] %s1257
          %1263 = dma.vmem_to_hbm [thread:$0]  %s1258, 1024, %s1256, %s1244, 128, 128, 8
        $region98: #{tpu_custom_call.1} parent=77 // pred_fallthru
          _
      $region78: #{tpu_custom_call.1} parent=5 // pred_fallthru
        _
      %p1264 = scmp.le.s32.totalorder 2, %s16
      // Predicated region
      $region99: #{tpu_custom_call.1} parent=5 // pred_check
        %p1265 = pneg %p1264
      $region100: #{tpu_custom_call.1} parent=5 // pred_check_branch
        %1267 = sbr.rel (%p1265) target = $region102
      $region101: #{tpu_custom_call.1} parent=5 // pred_region
        %s1268 = ssub.s32 %s16, 2
        // Predicated region
        $region103: #{tpu_custom_call.1} parent=101 // pred_check
          %p1269 = pneg %p207
        $region104: #{tpu_custom_call.1} parent=101 // pred_check_branch
          %1271 = sbr.rel (%p1269) target = $region106
        $region105: #{tpu_custom_call.1} parent=101 // pred_region
          %s1272 = sand.u32 %s192, 1
          %s1273 = scalar_lea.sflag [#allocation9], %s1272
          %s1274 = sand.u32 %s192, 1
          %s1275 = smul.addr %s1274, 64
          %s1276 = scalar_lea.vmem [#allocation10], %s1275
          %1277 = dma.done %s1273, 1024
        $region106: #{tpu_custom_call.1} parent=101 // pred_fallthru
          _
      $region102: #{tpu_custom_call.1} parent=5 // pred_fallthru
        _
    $region6: #{tpu_custom_call.1} parent=1 // loop_footer
      %s20 = sadd.s32 1, %s16
    $region7: #{tpu_custom_call.1} parent=1 // loop_footer_branch
      %15 = sbr.rel target = $region3
    $region8: #{tpu_custom_call.1} parent=1 // loop_exit
      _
    %1278 = vsyncpa [#allocation8], 1
    %s1279 = scalar_lea.sflag [#allocation8], 1
    %1280 = vsyncpa %s1279, 1
    %1281 = vsyncpa [#allocation9], 1
    %s1282 = scalar_lea.sflag [#allocation9], 1
    %1283 = vsyncpa %s1282, 1

</llo_original>
